<compile_context>
chip_gen: v5e
topology: v5e:2x2
jax: 0.10.0
libtpu: 0.0.40
codegen_flags: <defaults>
</compile_context>

<pallas_src>
import functools

import jax
import jax.numpy as jnp
from jax import lax
from jax.experimental import pallas as pl
from jax.experimental.pallas import tpu as pltpu

_LANES = 128
_SUBLANES = 8
_TILE_BYTES = 2 * 1024 * 1024        # ~2 MiB per input block (double-buffered: 4 MiB)
_FAST_PATH_BYTES = 4 * 1024 * 1024   # below this, XLA's fused reduction wins
_VMEM_LIMIT_BYTES = 48 * 1024 * 1024  # headroom for f32 cast / masked-branch temps


def _num_tensorcores():
    """2 TensorCores per chip on v7x, 1 on v5e/v6e (and anything unknown)."""
    try:
        kind = jax.devices()[0].device_kind.lower()
    except Exception:
        return 1
    return 2 if "v7" in kind else 1


def _row_tile_for(dtype):
    """Rows per block so each block is ~_TILE_BYTES regardless of input dtype."""
    itemsize = jnp.dtype(dtype).itemsize
    rows = _TILE_BYTES // (_LANES * itemsize)
    # Keep a multiple of the packed min sublane tile (8 for f32, 16 for bf16, ...).
    pack = max(_SUBLANES, (_SUBLANES * 4) // itemsize)
    return max(pack, (rows // pack) * pack)


def _partial_reduce_kernel(x_ref, o_ref, *, mode, total_rows, row_tile,
                           blocks_per_core, n_full_blocks, needs_mask):
    """Accumulate per-(sublane, lane) partial sums of (x-1)^2 (mse) or x (hinge)."""
    p = pl.program_id(0)    # core-split axis
    i = pl.program_id(1)    # accumulation axis ("arbitrary")

    @pl.when(i == 0)
    def _():
        o_ref[...] = jnp.zeros_like(o_ref)

    x = x_ref[...].astype(jnp.float32)            # (row_tile, 128), cast in-kernel

    def accumulate(xv):
        if mode == "mse":
            d = xv - 1.0
            c = d * d
        else:                                     # hinge
            c = xv
        # (row_tile, 128) -> (row_tile/8, 8, 128): sublane-split is layout
        # preserving; the leading-axis sum lowers to plain vector adds (no
        # per-step cross-lane XLU reduce).  The single cross-lane sum happens
        # once in glue JAX.
        o_ref[...] += c.reshape(row_tile // _SUBLANES, _SUBLANES, _LANES).sum(axis=0)

    if not needs_mask:
        accumulate(x)
    else:
        logical_block = p * blocks_per_core + i   # un-clamped logical block id

        # Interior blocks: lean path, no iota / compare / select.
        @pl.when(logical_block < n_full_blocks)
        def _():
            accumulate(x)

        # Tail / clamped-duplicate blocks: mask rows past the real data with the
        # reduction identity *before* the arithmetic.
        @pl.when(logical_block >= n_full_blocks)
        def _():
            identity = 1.0 if mode == "mse" else 0.0
            row0 = logical_block * row_tile
            row_ids = row0 + lax.broadcasted_iota(jnp.int32, (row_tile, _LANES), 0)
            accumulate(jnp.where(row_ids < total_rows, x, identity))


def _pallas_reduce_sum(x2d, mode):
    """sum((x-1)^2) for mode='mse' or sum(x) for mode='hinge' over a (R, 128) slab."""
    total_rows = x2d.shape[0]
    row_tile = _row_tile_for(x2d.dtype)
    n_cores = _num_tensorcores()

    n_blocks = -(-total_rows // row_tile)
    blocks_per_core = -(-n_blocks // n_cores)
    n_full_blocks = total_rows // row_tile
    needs_mask = (total_rows % row_tile != 0) or (blocks_per_core * n_cores != n_blocks)

    kernel = functools.partial(
        _partial_reduce_kernel, mode=mode, total_rows=total_rows,
        row_tile=row_tile, blocks_per_core=blocks_per_core,
        n_full_blocks=n_full_blocks, needs_mask=needs_mask)

    def in_map(p, i):
        # Clamp so a (fully masked) trailing block of the last core re-reads a
        # valid block instead of indexing past the end of the array.
        return (jnp.minimum(p * blocks_per_core + i, n_blocks - 1), 0)

    if n_cores > 1:
        # Real 2-TC split on v7x; leading axis is the core axis.
        semantics = (getattr(pltpu, "CORE_PARALLEL", pltpu.PARALLEL), pltpu.ARBITRARY)
    else:
        semantics = (pltpu.ARBITRARY, pltpu.ARBITRARY)

    n_elem = x2d.size
    itemsize = jnp.dtype(x2d.dtype).itemsize
    cost = pl.CostEstimate(
        flops=(3 if mode == "mse" else 1) * n_elem,
        transcendentals=0,
        bytes_accessed=n_elem * itemsize + n_cores * _SUBLANES * _LANES * 4,
    )

    partials = pl.pallas_call(
        kernel,
        out_shape=jax.ShapeDtypeStruct((n_cores * _SUBLANES, _LANES), jnp.float32),
        grid_spec=pltpu.PrefetchScalarGridSpec(
            num_scalar_prefetch=0,
            grid=(n_cores, blocks_per_core),
            in_specs=[pl.BlockSpec((row_tile, _LANES), in_map)],
            out_specs=pl.BlockSpec((_SUBLANES, _LANES), lambda p, i: (p, 0)),
        ),
        compiler_params=pltpu.CompilerParams(
            dimension_semantics=semantics,
            vmem_limit_bytes=_VMEM_LIMIT_BYTES,
        ),
        cost_estimate=cost,
    )(x2d)

    return jnp.sum(partials)


def _criterion_value(x, loss_type):
    n_elem = x.size
    nbytes = n_elem * jnp.dtype(x.dtype).itemsize
    if nbytes < _FAST_PATH_BYTES or n_elem % _LANES != 0:
        # Small/medium or non-lane-aligned tensors: XLA's fused reduction beats
        # a standalone custom-call launch and fuses across discriminators.
        xf = x.astype(jnp.float32)
        if loss_type == "mse":
            return jnp.mean((xf - 1.0) ** 2)
        return -jnp.mean(xf)

    x2d = x.reshape(-1, _LANES)      # free row-major reshape; keeps original dtype
    total = _pallas_reduce_sum(x2d, loss_type)
    mean = total / jnp.float32(n_elem)
    return mean if loss_type == "mse" else -mean


class GeneratorAdversarialLoss:
    """JAX / Pallas port of the PyTorch GeneratorAdversarialLoss module."""

    def __init__(self, average_by_discriminators=True, loss_type="mse"):
        assert loss_type in ["mse", "hinge"], f"{loss_type} is not supported."
        self.average_by_discriminators = average_by_discriminators
        self.loss_type = loss_type

    def __call__(self, outputs):
        if isinstance(outputs, (tuple, list)):
            adv_loss = jnp.float32(0.0)
            i = 0
            for i, outputs_ in enumerate(outputs):
                if isinstance(outputs_, (tuple, list)):
                    outputs_ = outputs_[-1]
                adv_loss = adv_loss + _criterion_value(outputs_, self.loss_type)
            if self.average_by_discriminators:
                adv_loss = adv_loss / jnp.float32(i + 1)
        else:
            adv_loss = _criterion_value(outputs, self.loss_type)
        return adv_loss


# ----------------------------- reference (pure JAX) -----------------------------
def _ref_loss(outputs, average_by_discriminators, loss_type):
    def crit(x):
        x = x.astype(jnp.float32)
        if loss_type == "mse":
            return jnp.mean((x - 1.0) ** 2)
        return -jnp.mean(x)

    if isinstance(outputs, (tuple, list)):
        adv = jnp.float32(0.0)
        i = 0
        for i, o in enumerate(outputs):
            if isinstance(o, (tuple, list)):
                o = o[-1]
            adv = adv + crit(o)
        if average_by_discriminators:
            adv = adv / jnp.float32(i + 1)
        return adv
    return crit(outputs)


if __name__ == "__main__":
    key = jax.random.PRNGKey(0)
    keys = jax.random.split(key, 8)

    # Small multi-scale discriminator outputs (NCT from Conv1d stacks) -> fast path.
    d1_fmap = jax.random.normal(keys[0], (2, 4, 16), dtype=jnp.float32)
    d1_out = jax.random.normal(keys[1], (2, 1, 16), dtype=jnp.float32)
    d2_out = jax.random.normal(keys[2], (2, 1, 8), dtype=jnp.float32)
    d3_out = jax.random.normal(keys[3], (2, 1, 37), dtype=jnp.float32)       # ragged size

    # Larger outputs that exercise the Pallas streaming-reduction path.
    d4_out = jax.random.normal(keys[4], (2, 4, 262144), dtype=jnp.float32)   # 8 MiB, exact blocks
    d5_out = jax.random.normal(keys[5], (2, 1, 640000), dtype=jnp.float32)   # ~4.9 MiB, ragged tail block
    d6_out = jax.random.normal(keys[6], (2, 1, 3000000), dtype=jnp.bfloat16) # ~5.7 MiB bf16, ragged tail

    outputs = [[d1_fmap, d1_out], d2_out, d3_out, d4_out, [d1_fmap, d5_out], d6_out]

    ok = True
    for loss_type in ("mse", "hinge"):
        for avg in (True, False):
            mod = GeneratorAdversarialLoss(average_by_discriminators=avg,
                                           loss_type=loss_type)
            got = jax.block_until_ready(mod(outputs))
            want = jax.block_until_ready(_ref_loss(outputs, avg, loss_type))
            if not jnp.allclose(got, want, rtol=1e-4, atol=1e-5):
                ok = False
                print(f"MISMATCH loss_type={loss_type} avg={avg}: {got} vs {want}")

    # Single-tensor (non-list) path: one large (Pallas) and one tiny (fast path).
    for single in (d4_out, d3_out):
        for loss_type in ("mse", "hinge"):
            mod = GeneratorAdversarialLoss(loss_type=loss_type)
            got = jax.block_until_ready(mod(single))
            want = jax.block_until_ready(_ref_loss(single, True, loss_type))
            if not jnp.allclose(got, want, rtol=1e-4, atol=1e-5):
                ok = False
                print(f"MISMATCH single-tensor loss_type={loss_type}: {got} vs {want}")

    if ok:
        print("KERNEL_OK")
</pallas_src>

<mosaic_0001>
module attributes {stable_mosaic.version = 11 : i64} {
  func.func @_partial_reduce_kernel(%arg0: i32, %arg1: i32, %arg2: memref<4096x128xf32, #tpu.memory_space<vmem>>, %arg3: memref<8x128xf32, #tpu.memory_space<vmem>>) attributes {dimension_semantics = [#tpu.dimension_semantics<arbitrary>, #tpu.dimension_semantics<arbitrary>], iteration_bounds = array<i64: 1, 4>, scalar_prefetch = 0 : i64, scratch_operands = 0 : i64, tpu.core_type = #tpu.core_type<tc>, window_params = [{transform_indices = @transform_0, window_bounds = array<i64: 4096, 128>}, {transform_indices = @transform_1, window_bounds = array<i64: 8, 128>}]} {
    %c0_i32 = arith.constant 0 : i32
    %0 = arith.cmpi eq, %arg1, %c0_i32 : i32
    %1 = arith.extui %0 : i1 to i32
    %c0_i32_0 = arith.constant 0 : i32
    %2 = arith.cmpi ne, %1, %c0_i32_0 : i32
    scf.if %2 {
      %cst_7 = arith.constant 0.000000e+00 : f32
      %12 = vector.broadcast %cst_7 : f32 to vector<8x128xf32>
      %c0_8 = arith.constant 0 : index
      %c0_9 = arith.constant 0 : index
      %13 = vector.load %arg3[%c0_8, %c0_9] : memref<8x128xf32, #tpu.memory_space<vmem>>, vector<8x128xf32>
      tpu.vector_store %arg3[%c0_8, %c0_9], %12 {strides = array<i32>} : memref<8x128xf32, #tpu.memory_space<vmem>>, vector<8x128xf32>,
    } else {
    }
    %c0 = arith.constant 0 : index
    %c0_1 = arith.constant 0 : index
    %3 = vector.load %arg2[%c0, %c0_1] : memref<4096x128xf32, #tpu.memory_space<vmem>>, vector<4096x128xf32>
    %cst = arith.constant 1.000000e+00 : f32
    %4 = vector.broadcast %cst : f32 to vector<4096x128xf32>
    %5 = arith.subf %3, %4 : vector<4096x128xf32>
    %6 = arith.mulf %5, %5 : vector<4096x128xf32>
    %c0_2 = arith.constant 0 : index
    %c0_3 = arith.constant 0 : index
    %7 = vector.load %arg3[%c0_2, %c0_3] : memref<8x128xf32, #tpu.memory_space<vmem>>, vector<8x128xf32>
    %8 = vector.shape_cast %6 : vector<4096x128xf32> to vector<512x8x128xf32>
    %cst_4 = arith.constant dense<0.000000e+00> : vector<8x128xf32>
    %9 = vector.multi_reduction <add>, %8, %cst_4 [0] : vector<512x8x128xf32> to vector<8x128xf32>
    %10 = arith.addf %7, %9 : vector<8x128xf32>
    %c0_5 = arith.constant 0 : index
    %c0_6 = arith.constant 0 : index
    %11 = vector.load %arg3[%c0_5, %c0_6] : memref<8x128xf32, #tpu.memory_space<vmem>>, vector<8x128xf32>
    tpu.vector_store %arg3[%c0_5, %c0_6], %10 {strides = array<i32>} : memref<8x128xf32, #tpu.memory_space<vmem>>, vector<8x128xf32>,
    return
  }
  func.func @transform_0(%arg0: i32, %arg1: i32) -> (i32, i32) {
    %c4_i32 = arith.constant 4 : i32
    %0 = arith.muli %arg0, %c4_i32 : i32
    %1 = arith.addi %0, %arg1 : i32
    %c3_i32 = arith.constant 3 : i32
    %2 = arith.minsi %1, %c3_i32 : i32
    %c0_i32 = arith.constant 0 : i32
    %c0_i32_0 = arith.constant 0 : i32
    return %2, %c0_i32 : i32, i32
  }
  func.func @transform_1(%arg0: i32, %arg1: i32) -> (i32, i32) {
    %c0_i32 = arith.constant 0 : i32
    %c0_i32_0 = arith.constant 0 : i32
    return %arg0, %c0_i32 : i32, i32
  }
}

</mosaic_0001>

<llo_original>
// kernel: tpu_custom_call.1
$region0: #{tpu_custom_call.1}
  #allocation0 [shape = 'u32[]', space=smem, size = 0x4, offset = 0x4, fixed_abs, tag = 'smem constant byte address 0x4 - core index']
  #allocation1 [shape = 'u32[72,128]{1,0:T(1,128)}', space=vmem, size = 0x9000, scoped, tag = 'internal scratch']
  %s0 = inlined_call_operand.hbm [shape: f32[16384,128], index: 0, kind: input, shape index: {}]
  %s1 = inlined_call_operand.hbm [shape: f32[8,128], index: 1, kind: output, shape index: {}]
  %s2 = sld [smem:[#allocation0]]
  $region45: #{tpu_custom_call.1} parent=0
    _
  %s4 = ssub.s32 1, %s2
  %s5 = scalar_select 0, %s4, %s2
  $region1: #{tpu_custom_call.1} parent=0
    #allocation2 [shape = 'u8[4194304]{0}', space=vmem, size = 0x400000, scoped, tag = 'input window, operand 0']
    #allocation3 [shape = 's32[2]{0}', space=sflag, size = 0x8, scoped, tag = 'scoped memory for tpu_custom_call.1']
    #allocation4 [shape = 's32[2]{0}', space=sflag, size = 0x8, scoped, tag = 'scoped memory for tpu_custom_call.1']
    #allocation5 [shape = 'u8[4096]{0}', space=vmem, size = 0x1000, scoped, tag = 'output window, operand 0, single buffered']
    %6 = vsyncpa [#allocation3], 0
    %s7 = scalar_lea.sflag [#allocation3], 1
    %8 = vsyncpa %s7, 0
    %9 = vsyncpa [#allocation4], 0
    loop: start=0, step=1, limit=6
    $region2: #{tpu_custom_call.1} parent=1 // loop_pre_header
      _
    $region3: #{tpu_custom_call.1} parent=1 // loop_header
      %s11 = sphi 0, %s15
      %p12 = scmp.ge.s32.totalorder %s11, 6
      %s18 = sphi 0, %s30
      %s19 = sphi 0, %s26
      %s20 = sphi 0, %s18
      %s21 = sphi 0, %s19
      %s22 = sphi 0, %s20
      %s23 = sphi 0, %s21
      %s41 = sphi 0, %s43
      %s44 = sphi 0, %s41
      %s45 = sphi 0, %s44
      %s61 = sphi 0, %s45
      %s67 = sphi 0, %s69
      %s70 = sphi 0, %s67
      %s71 = sphi 0, %s70
      %s87 = sphi 0, %s71
    $region4: #{tpu_custom_call.1} parent=1 // loop_header_branch
      %14 = sbr.rel (%p12) target = $region8
    $region5: #{tpu_custom_call.1} parent=1 // loop_body
      %s16 = ssub.s32 %s11, 1
      %s17 = ssub.s32 %s11, 2
      %s24 = sadd.s32 1, %s19
      %p25 = scmp.ge.s32.totalorder %s24, 4
      %s26 = scalar_select %p25, 0, %s24
      %s27 = sadd.s32 1, %s18
      %s28 = scalar_select %p25, %s27, %s18
      %p29 = scmp.ge.s32.totalorder %s28, 1
      %s30 = scalar_select %p29, 0, %s28
      %s31 = smul.u32 %s18, 4
      %s32 = sadd.s32 %s31, %s19
      %p33 = scmp.lt.s32.totalorder %s32, 3
      %s34 = scalar_select %p33, %s32, 3
      %s35 = smul.u32 %s30, 4
      %s36 = sadd.s32 %s35, %s26
      %p37 = scmp.lt.s32.totalorder %s36, 3
      %s38 = scalar_select %p37, %s36, 3
      %s39 = ssub.s32 %s34, %s38
      %p40 = scmp.eq.s32.totalorder %s39, 0
      %s42 = sadd.s32 %s41, 1
      %s43 = scalar_select %p40, %s41, %s42
      %p46 = pneg %p40
      %p47 = scmp.eq.s32.totalorder %s11, 3
      %p48 = por %p46, %p47
      %p49 = scmp.ne.s32.totalorder %s41, %s44
      %p50 = scmp.eq.s32.totalorder %s11, 0
      %p51 = por %p49, %p50
      %p52 = scmp.ne.s32.totalorder %s41, %s44
      %p53 = scmp.eq.s32.totalorder %s16, 3
      %p54 = por %p52, %p53
      %p55 = scmp.ne.s32.totalorder %s44, %s45
      %p56 = scmp.eq.s32.totalorder %s16, 0
      %p57 = por %p55, %p56
      %p58 = scmp.ne.s32.totalorder %s44, %s45
      %p59 = scmp.eq.s32.totalorder %s17, 3
      %p60 = por %p58, %p59
      %p62 = scmp.ne.s32.totalorder %s45, %s61
      %p63 = scmp.eq.s32.totalorder %s17, 0
      %p64 = por %p62, %p63
      %s65 = ssub.s32 %s18, %s30
      %p66 = scmp.eq.s32.totalorder %s65, 0
      %s68 = sadd.s32 %s67, 1
      %s69 = scalar_select %p66, %s67, %s68
      %p72 = pneg %p66
      %p73 = scmp.eq.s32.totalorder %s11, 3
      %p74 = por %p72, %p73
      %p75 = scmp.ne.s32.totalorder %s67, %s70
      %p76 = scmp.eq.s32.totalorder %s11, 0
      %p77 = por %p75, %p76
      %p78 = scmp.ne.s32.totalorder %s67, %s70
      %p79 = scmp.eq.s32.totalorder %s16, 3
      %p80 = por %p78, %p79
      %p81 = scmp.ne.s32.totalorder %s70, %s71
      %p82 = scmp.eq.s32.totalorder %s16, 0
      %p83 = por %p81, %p82
      %p84 = scmp.ne.s32.totalorder %s70, %s71
      %p85 = scmp.eq.s32.totalorder %s17, 3
      %p86 = por %p84, %p85
      %p88 = scmp.ne.s32.totalorder %s71, %s87
      %p89 = scmp.eq.s32.totalorder %s17, 0
      %p90 = por %p88, %p89
      %p91 = scmp.le.s32.totalorder 1, %s11
      %p92 = scmp.lt.s32.totalorder %s11, 5
      %p93 = pnand %p91, %p92
      %p94 = pneg %p93
      // Predicated region
      $region9: #{tpu_custom_call.1} parent=5 // pred_check
        _
      $region10: #{tpu_custom_call.1} parent=5 // pred_check_branch
        %96 = sbr.rel (%p93) target = $region12
      $region11: #{tpu_custom_call.1} parent=5 // pred_region
        %s97 = ssub.s32 %s11, 1
      $region12: #{tpu_custom_call.1} parent=5 // pred_fallthru
        _
      %p98 = scmp.lt.s32.totalorder %s11, 4
      // Predicated region
      $region13: #{tpu_custom_call.1} parent=5 // pred_check
        %p99 = pneg %p98
      $region14: #{tpu_custom_call.1} parent=5 // pred_check_branch
        %101 = sbr.rel (%p99) target = $region16
      $region15: #{tpu_custom_call.1} parent=5 // pred_region
        // Predicated region
        $region17: #{tpu_custom_call.1} parent=15 // pred_check
          %p102 = pneg %p51
        $region18: #{tpu_custom_call.1} parent=15 // pred_check_branch
          %104 = sbr.rel (%p102) target = $region20
        $region19: #{tpu_custom_call.1} parent=15 // pred_region
          %s105 = sand.u32 %s41, 1
          %s106 = scalar_lea.sflag [#allocation3], %s105
          %s107 = sand.u32 %s41, 1
          %s108 = smul.addr %s107, 4096
          %s109 = scalar_lea.vmem [#allocation2], %s108
          %s110 = smul.u32 %s18, 4
          %s111 = sadd.s32 %s110, %s19
          %p112 = scmp.lt.s32.totalorder %s111, 3
          %s113 = scalar_select %p112, %s111, 3
          %s114 = smul.u32 512, %s113
          %116 = vsyncadd %s106, 0
          %s117 = smul.addr %s114, 8
          %s118 = scalar_lea.hbm %s0, %s117
          %s119 = sshll.u32 %s118, 4
          %s120 = int_to_ptr.hbm [resolvable:$true] %s119
          %s121 = sshll.u32 %s109, 4
          %s122 = int_to_ptr.vmem [resolvable:$true] %s121
          %127 = dma.hbm_to_vmem [thread:$0]  %s120, 65536, %s122, %s106, 128, 128, 8
        $region20: #{tpu_custom_call.1} parent=15 // pred_fallthru
          _
      $region16: #{tpu_custom_call.1} parent=5 // pred_fallthru
        _
      %p128 = scmp.le.s32.totalorder 1, %s11
      %p129 = scmp.lt.s32.totalorder %s11, 5
      %p130 = pnand %p128, %p129
      %p131 = pneg %p130
      // Predicated region
      $region21: #{tpu_custom_call.1} parent=5 // pred_check
        _
      $region22: #{tpu_custom_call.1} parent=5 // pred_check_branch
        %133 = sbr.rel (%p130) target = $region24
      $region23: #{tpu_custom_call.1} parent=5 // pred_region
        %s134 = ssub.s32 %s11, 1
        %s135 = sand.u32 %s44, 1
        %s136 = scalar_lea.sflag [#allocation3], %s135
        %s137 = sand.u32 %s44, 1
        %s138 = smul.addr %s137, 4096
        %s139 = scalar_lea.vmem [#allocation2], %s138
        // Predicated region
        $region25: #{tpu_custom_call.1} parent=23 // pred_check
          %p140 = pneg %p57
        $region26: #{tpu_custom_call.1} parent=23 // pred_check_branch
          %142 = sbr.rel (%p140) target = $region28
        $region27: #{tpu_custom_call.1} parent=23 // pred_region
          %144 = dma.done %s136, 65536
        $region28: #{tpu_custom_call.1} parent=23 // pred_fallthru
          _
        %s145 = sand.u32 %s44, 1
        %s146 = scalar_lea.sflag [#allocation3], %s145
        %s147 = sand.u32 %s44, 1
        %s148 = smul.addr %s147, 4096
        %s149 = scalar_lea.vmem [#allocation2], %s148
        %p150 = pneg %p57
        %p151 = pneg %p54
        %p152 = pneg %p83
        %p153 = pneg %p80
        %s154 = smul.u32 %s20, 4
        %s155 = sadd.s32 %s154, %s21
        %p156 = scmp.lt.s32.totalorder %s155, 3
        %s157 = scalar_select %p156, %s155, 3
        %s158 = smul.u32 512, %s157
        %p159 = scmp.eq.s32.totalorder %s21, 0
        // Predicated region
        $region29: #{tpu_custom_call.1} parent=23 // pred_check
          %p160 = pneg %p159
        $region30: #{tpu_custom_call.1} parent=23 // pred_check_branch
          %162 = sbr.rel (%p160) target = $region32
        $region31: #{tpu_custom_call.1} parent=23 // pred_region
          %163 = vst [vmem:[#allocation5] sm:$0xff] 0.0
        $region32: #{tpu_custom_call.1} parent=23 // pred_fallthru
          _
        %v164 = vld [vmem:[%s139] sm:$0xff]
        %v165 = vld [vmem:[%s139 + $0x8] sm:$0xff]
        %v166 = vld [vmem:[%s139 + $0x10] sm:$0xff]
        %v167 = vld [vmem:[%s139 + $0x18] sm:$0xff]
        %v168 = vld [vmem:[%s139 + $0x20] sm:$0xff]
        %v169 = vld [vmem:[%s139 + $0x28] sm:$0xff]
        %v170 = vld [vmem:[%s139 + $0x30] sm:$0xff]
        %v171 = vld [vmem:[%s139 + $0x38] sm:$0xff]
        %v172 = vld [vmem:[%s139 + $0x40] sm:$0xff]
        %v173 = vld [vmem:[%s139 + $0x48] sm:$0xff]
        %v174 = vld [vmem:[%s139 + $0x50] sm:$0xff]
        %v175 = vld [vmem:[%s139 + $0x58] sm:$0xff]
        %v176 = vld [vmem:[%s139 + $0x60] sm:$0xff]
        %v177 = vld [vmem:[%s139 + $0x68] sm:$0xff]
        %v178 = vld [vmem:[%s139 + $0x70] sm:$0xff]
        %v179 = vld [vmem:[%s139 + $0x78] sm:$0xff]
        %v180 = vld [vmem:[%s139 + $0x80] sm:$0xff]
        %v181 = vld [vmem:[%s139 + $0x88] sm:$0xff]
        %v182 = vld [vmem:[%s139 + $0x90] sm:$0xff]
        %v183 = vld [vmem:[%s139 + $0x98] sm:$0xff]
        %v184 = vld [vmem:[%s139 + $0xa0] sm:$0xff]
        %v185 = vld [vmem:[%s139 + $0xa8] sm:$0xff]
        %v186 = vld [vmem:[%s139 + $0xb0] sm:$0xff]
        %v187 = vld [vmem:[%s139 + $0xb8] sm:$0xff]
        %v188 = vld [vmem:[%s139 + $0xc0] sm:$0xff]
        %v189 = vld [vmem:[%s139 + $0xc8] sm:$0xff]
        %v190 = vld [vmem:[%s139 + $0xd0] sm:$0xff]
        %v191 = vld [vmem:[%s139 + $0xd8] sm:$0xff]
        %v192 = vld [vmem:[%s139 + $0xe0] sm:$0xff]
        %v193 = vld [vmem:[%s139 + $0xe8] sm:$0xff]
        %v194 = vld [vmem:[%s139 + $0xf0] sm:$0xff]
        %v195 = vld [vmem:[%s139 + $0xf8] sm:$0xff]
        %v196 = vld [vmem:[%s139 + $0x100] sm:$0xff]
        %v197 = vld [vmem:[%s139 + $0x108] sm:$0xff]
        %v198 = vld [vmem:[%s139 + $0x110] sm:$0xff]
        %v199 = vld [vmem:[%s139 + $0x118] sm:$0xff]
        %v200 = vld [vmem:[%s139 + $0x120] sm:$0xff]
        %v201 = vld [vmem:[%s139 + $0x128] sm:$0xff]
        %v202 = vld [vmem:[%s139 + $0x130] sm:$0xff]
        %v203 = vld [vmem:[%s139 + $0x138] sm:$0xff]
        %v204 = vld [vmem:[%s139 + $0x140] sm:$0xff]
        %v205 = vld [vmem:[%s139 + $0x148] sm:$0xff]
        %v206 = vld [vmem:[%s139 + $0x150] sm:$0xff]
        %v207 = vld [vmem:[%s139 + $0x158] sm:$0xff]
        %v208 = vld [vmem:[%s139 + $0x160] sm:$0xff]
        %v209 = vld [vmem:[%s139 + $0x168] sm:$0xff]
        %v210 = vld [vmem:[%s139 + $0x170] sm:$0xff]
        %v211 = vld [vmem:[%s139 + $0x178] sm:$0xff]
        %v212 = vld [vmem:[%s139 + $0x180] sm:$0xff]
        %v213 = vld [vmem:[%s139 + $0x188] sm:$0xff]
        %v214 = vld [vmem:[%s139 + $0x190] sm:$0xff]
        %v215 = vld [vmem:[%s139 + $0x198] sm:$0xff]
        %v216 = vld [vmem:[%s139 + $0x1a0] sm:$0xff]
        %v217 = vld [vmem:[%s139 + $0x1a8] sm:$0xff]
        %v218 = vld [vmem:[%s139 + $0x1b0] sm:$0xff]
        %v219 = vld [vmem:[%s139 + $0x1b8] sm:$0xff]
        %v220 = vld [vmem:[%s139 + $0x1c0] sm:$0xff]
        %v221 = vld [vmem:[%s139 + $0x1c8] sm:$0xff]
        %v222 = vld [vmem:[%s139 + $0x1d0] sm:$0xff]
        %v223 = vld [vmem:[%s139 + $0x1d8] sm:$0xff]
        %v224 = vld [vmem:[%s139 + $0x1e0] sm:$0xff]
        %v225 = vld [vmem:[%s139 + $0x1e8] sm:$0xff]
        %v226 = vld [vmem:[%s139 + $0x1f0] sm:$0xff]
        %v227 = vld [vmem:[%s139 + $0x1f8] sm:$0xff]
        %v228 = vld [vmem:[%s139 + $0x200] sm:$0xff]
        %v229 = vld [vmem:[%s139 + $0x208] sm:$0xff]
        %v230 = vld [vmem:[%s139 + $0x210] sm:$0xff]
        %v231 = vld [vmem:[%s139 + $0x218] sm:$0xff]
        %v232 = vld [vmem:[%s139 + $0x220] sm:$0xff]
        %v233 = vld [vmem:[%s139 + $0x228] sm:$0xff]
        %v234 = vld [vmem:[%s139 + $0x230] sm:$0xff]
        %v235 = vld [vmem:[%s139 + $0x238] sm:$0xff]
        %v236 = vld [vmem:[%s139 + $0x240] sm:$0xff]
        %v237 = vld [vmem:[%s139 + $0x248] sm:$0xff]
        %v238 = vld [vmem:[%s139 + $0x250] sm:$0xff]
        %v239 = vld [vmem:[%s139 + $0x258] sm:$0xff]
        %v240 = vld [vmem:[%s139 + $0x260] sm:$0xff]
        %v241 = vld [vmem:[%s139 + $0x268] sm:$0xff]
        %v242 = vld [vmem:[%s139 + $0x270] sm:$0xff]
        %v243 = vld [vmem:[%s139 + $0x278] sm:$0xff]
        %v244 = vld [vmem:[%s139 + $0x280] sm:$0xff]
        %v245 = vld [vmem:[%s139 + $0x288] sm:$0xff]
        %v246 = vld [vmem:[%s139 + $0x290] sm:$0xff]
        %v247 = vld [vmem:[%s139 + $0x298] sm:$0xff]
        %v248 = vld [vmem:[%s139 + $0x2a0] sm:$0xff]
        %v249 = vld [vmem:[%s139 + $0x2a8] sm:$0xff]
        %v250 = vld [vmem:[%s139 + $0x2b0] sm:$0xff]
        %v251 = vld [vmem:[%s139 + $0x2b8] sm:$0xff]
        %v252 = vld [vmem:[%s139 + $0x2c0] sm:$0xff]
        %v253 = vld [vmem:[%s139 + $0x2c8] sm:$0xff]
        %v254 = vld [vmem:[%s139 + $0x2d0] sm:$0xff]
        %v255 = vld [vmem:[%s139 + $0x2d8] sm:$0xff]
        %v256 = vld [vmem:[%s139 + $0x2e0] sm:$0xff]
        %v257 = vld [vmem:[%s139 + $0x2e8] sm:$0xff]
        %v258 = vld [vmem:[%s139 + $0x2f0] sm:$0xff]
        %v259 = vld [vmem:[%s139 + $0x2f8] sm:$0xff]
        %v260 = vld [vmem:[%s139 + $0x300] sm:$0xff]
        %v261 = vld [vmem:[%s139 + $0x308] sm:$0xff]
        %v262 = vld [vmem:[%s139 + $0x310] sm:$0xff]
        %v263 = vld [vmem:[%s139 + $0x318] sm:$0xff]
        %v264 = vld [vmem:[%s139 + $0x320] sm:$0xff]
        %v265 = vld [vmem:[%s139 + $0x328] sm:$0xff]
        %v266 = vld [vmem:[%s139 + $0x330] sm:$0xff]
        %v267 = vld [vmem:[%s139 + $0x338] sm:$0xff]
        %v268 = vld [vmem:[%s139 + $0x340] sm:$0xff]
        %v269 = vld [vmem:[%s139 + $0x348] sm:$0xff]
        %v270 = vld [vmem:[%s139 + $0x350] sm:$0xff]
        %v271 = vld [vmem:[%s139 + $0x358] sm:$0xff]
        %v272 = vld [vmem:[%s139 + $0x360] sm:$0xff]
        %v273 = vld [vmem:[%s139 + $0x368] sm:$0xff]
        %v274 = vld [vmem:[%s139 + $0x370] sm:$0xff]
        %v275 = vld [vmem:[%s139 + $0x378] sm:$0xff]
        %v276 = vld [vmem:[%s139 + $0x380] sm:$0xff]
        %v277 = vld [vmem:[%s139 + $0x388] sm:$0xff]
        %v278 = vld [vmem:[%s139 + $0x390] sm:$0xff]
        %v279 = vld [vmem:[%s139 + $0x398] sm:$0xff]
        %v280 = vld [vmem:[%s139 + $0x3a0] sm:$0xff]
        %v281 = vld [vmem:[%s139 + $0x3a8] sm:$0xff]
        %v282 = vld [vmem:[%s139 + $0x3b0] sm:$0xff]
        %v283 = vld [vmem:[%s139 + $0x3b8] sm:$0xff]
        %v284 = vld [vmem:[%s139 + $0x3c0] sm:$0xff]
        %v285 = vld [vmem:[%s139 + $0x3c8] sm:$0xff]
        %v286 = vld [vmem:[%s139 + $0x3d0] sm:$0xff]
        %v287 = vld [vmem:[%s139 + $0x3d8] sm:$0xff]
        %v288 = vld [vmem:[%s139 + $0x3e0] sm:$0xff]
        %v289 = vld [vmem:[%s139 + $0x3e8] sm:$0xff]
        %v290 = vld [vmem:[%s139 + $0x3f0] sm:$0xff]
        %v291 = vld [vmem:[%s139 + $0x3f8] sm:$0xff]
        %v292 = vld [vmem:[%s139 + $0x400] sm:$0xff]
        %v293 = vld [vmem:[%s139 + $0x408] sm:$0xff]
        %v294 = vld [vmem:[%s139 + $0x410] sm:$0xff]
        %v295 = vld [vmem:[%s139 + $0x418] sm:$0xff]
        %v296 = vld [vmem:[%s139 + $0x420] sm:$0xff]
        %v297 = vld [vmem:[%s139 + $0x428] sm:$0xff]
        %v298 = vld [vmem:[%s139 + $0x430] sm:$0xff]
        %v299 = vld [vmem:[%s139 + $0x438] sm:$0xff]
        %v300 = vld [vmem:[%s139 + $0x440] sm:$0xff]
        %v301 = vld [vmem:[%s139 + $0x448] sm:$0xff]
        %v302 = vld [vmem:[%s139 + $0x450] sm:$0xff]
        %v303 = vld [vmem:[%s139 + $0x458] sm:$0xff]
        %v304 = vld [vmem:[%s139 + $0x460] sm:$0xff]
        %v305 = vld [vmem:[%s139 + $0x468] sm:$0xff]
        %v306 = vld [vmem:[%s139 + $0x470] sm:$0xff]
        %v307 = vld [vmem:[%s139 + $0x478] sm:$0xff]
        %v308 = vld [vmem:[%s139 + $0x480] sm:$0xff]
        %v309 = vld [vmem:[%s139 + $0x488] sm:$0xff]
        %v310 = vld [vmem:[%s139 + $0x490] sm:$0xff]
        %v311 = vld [vmem:[%s139 + $0x498] sm:$0xff]
        %v312 = vld [vmem:[%s139 + $0x4a0] sm:$0xff]
        %v313 = vld [vmem:[%s139 + $0x4a8] sm:$0xff]
        %v314 = vld [vmem:[%s139 + $0x4b0] sm:$0xff]
        %v315 = vld [vmem:[%s139 + $0x4b8] sm:$0xff]
        %v316 = vld [vmem:[%s139 + $0x4c0] sm:$0xff]
        %v317 = vld [vmem:[%s139 + $0x4c8] sm:$0xff]
        %v318 = vld [vmem:[%s139 + $0x4d0] sm:$0xff]
        %v319 = vld [vmem:[%s139 + $0x4d8] sm:$0xff]
        %v320 = vld [vmem:[%s139 + $0x4e0] sm:$0xff]
        %v321 = vld [vmem:[%s139 + $0x4e8] sm:$0xff]
        %v322 = vld [vmem:[%s139 + $0x4f0] sm:$0xff]
        %v323 = vld [vmem:[%s139 + $0x4f8] sm:$0xff]
        %v324 = vld [vmem:[%s139 + $0x500] sm:$0xff]
        %v325 = vld [vmem:[%s139 + $0x508] sm:$0xff]
        %v326 = vld [vmem:[%s139 + $0x510] sm:$0xff]
        %v327 = vld [vmem:[%s139 + $0x518] sm:$0xff]
        %v328 = vld [vmem:[%s139 + $0x520] sm:$0xff]
        %v329 = vld [vmem:[%s139 + $0x528] sm:$0xff]
        %v330 = vld [vmem:[%s139 + $0x530] sm:$0xff]
        %v331 = vld [vmem:[%s139 + $0x538] sm:$0xff]
        %v332 = vld [vmem:[%s139 + $0x540] sm:$0xff]
        %v333 = vld [vmem:[%s139 + $0x548] sm:$0xff]
        %v334 = vld [vmem:[%s139 + $0x550] sm:$0xff]
        %v335 = vld [vmem:[%s139 + $0x558] sm:$0xff]
        %v336 = vld [vmem:[%s139 + $0x560] sm:$0xff]
        %v337 = vld [vmem:[%s139 + $0x568] sm:$0xff]
        %v338 = vld [vmem:[%s139 + $0x570] sm:$0xff]
        %v339 = vld [vmem:[%s139 + $0x578] sm:$0xff]
        %v340 = vld [vmem:[%s139 + $0x580] sm:$0xff]
        %v341 = vld [vmem:[%s139 + $0x588] sm:$0xff]
        %v342 = vld [vmem:[%s139 + $0x590] sm:$0xff]
        %v343 = vld [vmem:[%s139 + $0x598] sm:$0xff]
        %v344 = vld [vmem:[%s139 + $0x5a0] sm:$0xff]
        %v345 = vld [vmem:[%s139 + $0x5a8] sm:$0xff]
        %v346 = vld [vmem:[%s139 + $0x5b0] sm:$0xff]
        %v347 = vld [vmem:[%s139 + $0x5b8] sm:$0xff]
        %v348 = vld [vmem:[%s139 + $0x5c0] sm:$0xff]
        %v349 = vld [vmem:[%s139 + $0x5c8] sm:$0xff]
        %v350 = vld [vmem:[%s139 + $0x5d0] sm:$0xff]
        %v351 = vld [vmem:[%s139 + $0x5d8] sm:$0xff]
        %v352 = vld [vmem:[%s139 + $0x5e0] sm:$0xff]
        %v353 = vld [vmem:[%s139 + $0x5e8] sm:$0xff]
        %v354 = vld [vmem:[%s139 + $0x5f0] sm:$0xff]
        %v355 = vld [vmem:[%s139 + $0x5f8] sm:$0xff]
        %v356 = vld [vmem:[%s139 + $0x600] sm:$0xff]
        %v357 = vld [vmem:[%s139 + $0x608] sm:$0xff]
        %v358 = vld [vmem:[%s139 + $0x610] sm:$0xff]
        %v359 = vld [vmem:[%s139 + $0x618] sm:$0xff]
        %v360 = vld [vmem:[%s139 + $0x620] sm:$0xff]
        %v361 = vld [vmem:[%s139 + $0x628] sm:$0xff]
        %v362 = vld [vmem:[%s139 + $0x630] sm:$0xff]
        %v363 = vld [vmem:[%s139 + $0x638] sm:$0xff]
        %v364 = vld [vmem:[%s139 + $0x640] sm:$0xff]
        %v365 = vld [vmem:[%s139 + $0x648] sm:$0xff]
        %v366 = vld [vmem:[%s139 + $0x650] sm:$0xff]
        %v367 = vld [vmem:[%s139 + $0x658] sm:$0xff]
        %v368 = vld [vmem:[%s139 + $0x660] sm:$0xff]
        %v369 = vld [vmem:[%s139 + $0x668] sm:$0xff]
        %v370 = vld [vmem:[%s139 + $0x670] sm:$0xff]
        %v371 = vld [vmem:[%s139 + $0x678] sm:$0xff]
        %v372 = vld [vmem:[%s139 + $0x680] sm:$0xff]
        %v373 = vld [vmem:[%s139 + $0x688] sm:$0xff]
        %v374 = vld [vmem:[%s139 + $0x690] sm:$0xff]
        %v375 = vld [vmem:[%s139 + $0x698] sm:$0xff]
        %v376 = vld [vmem:[%s139 + $0x6a0] sm:$0xff]
        %v377 = vld [vmem:[%s139 + $0x6a8] sm:$0xff]
        %v378 = vld [vmem:[%s139 + $0x6b0] sm:$0xff]
        %v379 = vld [vmem:[%s139 + $0x6b8] sm:$0xff]
        %v380 = vld [vmem:[%s139 + $0x6c0] sm:$0xff]
        %v381 = vld [vmem:[%s139 + $0x6c8] sm:$0xff]
        %v382 = vld [vmem:[%s139 + $0x6d0] sm:$0xff]
        %v383 = vld [vmem:[%s139 + $0x6d8] sm:$0xff]
        %v384 = vld [vmem:[%s139 + $0x6e0] sm:$0xff]
        %v385 = vld [vmem:[%s139 + $0x6e8] sm:$0xff]
        %v386 = vld [vmem:[%s139 + $0x6f0] sm:$0xff]
        %v387 = vld [vmem:[%s139 + $0x6f8] sm:$0xff]
        %v388 = vld [vmem:[%s139 + $0x700] sm:$0xff]
        %v389 = vld [vmem:[%s139 + $0x708] sm:$0xff]
        %v390 = vld [vmem:[%s139 + $0x710] sm:$0xff]
        %v391 = vld [vmem:[%s139 + $0x718] sm:$0xff]
        %v392 = vld [vmem:[%s139 + $0x720] sm:$0xff]
        %v393 = vld [vmem:[%s139 + $0x728] sm:$0xff]
        %v394 = vld [vmem:[%s139 + $0x730] sm:$0xff]
        %v395 = vld [vmem:[%s139 + $0x738] sm:$0xff]
        %v396 = vld [vmem:[%s139 + $0x740] sm:$0xff]
        %v397 = vld [vmem:[%s139 + $0x748] sm:$0xff]
        %v398 = vld [vmem:[%s139 + $0x750] sm:$0xff]
        %v399 = vld [vmem:[%s139 + $0x758] sm:$0xff]
        %v400 = vld [vmem:[%s139 + $0x760] sm:$0xff]
        %v401 = vld [vmem:[%s139 + $0x768] sm:$0xff]
        %v402 = vld [vmem:[%s139 + $0x770] sm:$0xff]
        %v403 = vld [vmem:[%s139 + $0x778] sm:$0xff]
        %v404 = vld [vmem:[%s139 + $0x780] sm:$0xff]
        %v405 = vld [vmem:[%s139 + $0x788] sm:$0xff]
        %v406 = vld [vmem:[%s139 + $0x790] sm:$0xff]
        %v407 = vld [vmem:[%s139 + $0x798] sm:$0xff]
        %v408 = vld [vmem:[%s139 + $0x7a0] sm:$0xff]
        %v409 = vld [vmem:[%s139 + $0x7a8] sm:$0xff]
        %v410 = vld [vmem:[%s139 + $0x7b0] sm:$0xff]
        %v411 = vld [vmem:[%s139 + $0x7b8] sm:$0xff]
        %v412 = vld [vmem:[%s139 + $0x7c0] sm:$0xff]
        %v413 = vld [vmem:[%s139 + $0x7c8] sm:$0xff]
        %v414 = vld [vmem:[%s139 + $0x7d0] sm:$0xff]
        %v415 = vld [vmem:[%s139 + $0x7d8] sm:$0xff]
        %v416 = vld [vmem:[%s139 + $0x7e0] sm:$0xff]
        %v417 = vld [vmem:[%s139 + $0x7e8] sm:$0xff]
        %v418 = vld [vmem:[%s139 + $0x7f0] sm:$0xff]
        %v419 = vld [vmem:[%s139 + $0x7f8] sm:$0xff]
        %v420 = vld [vmem:[%s139 + $0x800] sm:$0xff]
        %v421 = vld [vmem:[%s139 + $0x808] sm:$0xff]
        %v422 = vld [vmem:[%s139 + $0x810] sm:$0xff]
        %v423 = vld [vmem:[%s139 + $0x818] sm:$0xff]
        %v424 = vld [vmem:[%s139 + $0x820] sm:$0xff]
        %v425 = vld [vmem:[%s139 + $0x828] sm:$0xff]
        %v426 = vld [vmem:[%s139 + $0x830] sm:$0xff]
        %v427 = vld [vmem:[%s139 + $0x838] sm:$0xff]
        %v428 = vld [vmem:[%s139 + $0x840] sm:$0xff]
        %v429 = vld [vmem:[%s139 + $0x848] sm:$0xff]
        %v430 = vld [vmem:[%s139 + $0x850] sm:$0xff]
        %v431 = vld [vmem:[%s139 + $0x858] sm:$0xff]
        %v432 = vld [vmem:[%s139 + $0x860] sm:$0xff]
        %v433 = vld [vmem:[%s139 + $0x868] sm:$0xff]
        %v434 = vld [vmem:[%s139 + $0x870] sm:$0xff]
        %v435 = vld [vmem:[%s139 + $0x878] sm:$0xff]
        %v436 = vld [vmem:[%s139 + $0x880] sm:$0xff]
        %v437 = vld [vmem:[%s139 + $0x888] sm:$0xff]
        %v438 = vld [vmem:[%s139 + $0x890] sm:$0xff]
        %v439 = vld [vmem:[%s139 + $0x898] sm:$0xff]
        %v440 = vld [vmem:[%s139 + $0x8a0] sm:$0xff]
        %v441 = vld [vmem:[%s139 + $0x8a8] sm:$0xff]
        %v442 = vld [vmem:[%s139 + $0x8b0] sm:$0xff]
        %v443 = vld [vmem:[%s139 + $0x8b8] sm:$0xff]
        %v444 = vld [vmem:[%s139 + $0x8c0] sm:$0xff]
        %v445 = vld [vmem:[%s139 + $0x8c8] sm:$0xff]
        %v446 = vld [vmem:[%s139 + $0x8d0] sm:$0xff]
        %v447 = vld [vmem:[%s139 + $0x8d8] sm:$0xff]
        %v448 = vld [vmem:[%s139 + $0x8e0] sm:$0xff]
        %v449 = vld [vmem:[%s139 + $0x8e8] sm:$0xff]
        %v450 = vld [vmem:[%s139 + $0x8f0] sm:$0xff]
        %v451 = vld [vmem:[%s139 + $0x8f8] sm:$0xff]
        %v452 = vld [vmem:[%s139 + $0x900] sm:$0xff]
        %v453 = vld [vmem:[%s139 + $0x908] sm:$0xff]
        %v454 = vld [vmem:[%s139 + $0x910] sm:$0xff]
        %v455 = vld [vmem:[%s139 + $0x918] sm:$0xff]
        %v456 = vld [vmem:[%s139 + $0x920] sm:$0xff]
        %v457 = vld [vmem:[%s139 + $0x928] sm:$0xff]
        %v458 = vld [vmem:[%s139 + $0x930] sm:$0xff]
        %v459 = vld [vmem:[%s139 + $0x938] sm:$0xff]
        %v460 = vld [vmem:[%s139 + $0x940] sm:$0xff]
        %v461 = vld [vmem:[%s139 + $0x948] sm:$0xff]
        %v462 = vld [vmem:[%s139 + $0x950] sm:$0xff]
        %v463 = vld [vmem:[%s139 + $0x958] sm:$0xff]
        %v464 = vld [vmem:[%s139 + $0x960] sm:$0xff]
        %v465 = vld [vmem:[%s139 + $0x968] sm:$0xff]
        %v466 = vld [vmem:[%s139 + $0x970] sm:$0xff]
        %v467 = vld [vmem:[%s139 + $0x978] sm:$0xff]
        %v468 = vld [vmem:[%s139 + $0x980] sm:$0xff]
        %v469 = vld [vmem:[%s139 + $0x988] sm:$0xff]
        %v470 = vld [vmem:[%s139 + $0x990] sm:$0xff]
        %v471 = vld [vmem:[%s139 + $0x998] sm:$0xff]
        %v472 = vld [vmem:[%s139 + $0x9a0] sm:$0xff]
        %v473 = vld [vmem:[%s139 + $0x9a8] sm:$0xff]
        %v474 = vld [vmem:[%s139 + $0x9b0] sm:$0xff]
        %v475 = vld [vmem:[%s139 + $0x9b8] sm:$0xff]
        %v476 = vld [vmem:[%s139 + $0x9c0] sm:$0xff]
        %v477 = vld [vmem:[%s139 + $0x9c8] sm:$0xff]
        %v478 = vld [vmem:[%s139 + $0x9d0] sm:$0xff]
        %v479 = vld [vmem:[%s139 + $0x9d8] sm:$0xff]
        %v480 = vld [vmem:[%s139 + $0x9e0] sm:$0xff]
        %v481 = vld [vmem:[%s139 + $0x9e8] sm:$0xff]
        %v482 = vld [vmem:[%s139 + $0x9f0] sm:$0xff]
        %v483 = vld [vmem:[%s139 + $0x9f8] sm:$0xff]
        %v484 = vld [vmem:[%s139 + $0xa00] sm:$0xff]
        %v485 = vld [vmem:[%s139 + $0xa08] sm:$0xff]
        %v486 = vld [vmem:[%s139 + $0xa10] sm:$0xff]
        %v487 = vld [vmem:[%s139 + $0xa18] sm:$0xff]
        %v488 = vld [vmem:[%s139 + $0xa20] sm:$0xff]
        %v489 = vld [vmem:[%s139 + $0xa28] sm:$0xff]
        %v490 = vld [vmem:[%s139 + $0xa30] sm:$0xff]
        %v491 = vld [vmem:[%s139 + $0xa38] sm:$0xff]
        %v492 = vld [vmem:[%s139 + $0xa40] sm:$0xff]
        %v493 = vld [vmem:[%s139 + $0xa48] sm:$0xff]
        %v494 = vld [vmem:[%s139 + $0xa50] sm:$0xff]
        %v495 = vld [vmem:[%s139 + $0xa58] sm:$0xff]
        %v496 = vld [vmem:[%s139 + $0xa60] sm:$0xff]
        %v497 = vld [vmem:[%s139 + $0xa68] sm:$0xff]
        %v498 = vld [vmem:[%s139 + $0xa70] sm:$0xff]
        %v499 = vld [vmem:[%s139 + $0xa78] sm:$0xff]
        %v500 = vld [vmem:[%s139 + $0xa80] sm:$0xff]
        %v501 = vld [vmem:[%s139 + $0xa88] sm:$0xff]
        %v502 = vld [vmem:[%s139 + $0xa90] sm:$0xff]
        %v503 = vld [vmem:[%s139 + $0xa98] sm:$0xff]
        %v504 = vld [vmem:[%s139 + $0xaa0] sm:$0xff]
        %v505 = vld [vmem:[%s139 + $0xaa8] sm:$0xff]
        %v506 = vld [vmem:[%s139 + $0xab0] sm:$0xff]
        %v507 = vld [vmem:[%s139 + $0xab8] sm:$0xff]
        %v508 = vld [vmem:[%s139 + $0xac0] sm:$0xff]
        %v509 = vld [vmem:[%s139 + $0xac8] sm:$0xff]
        %v510 = vld [vmem:[%s139 + $0xad0] sm:$0xff]
        %v511 = vld [vmem:[%s139 + $0xad8] sm:$0xff]
        %v512 = vld [vmem:[%s139 + $0xae0] sm:$0xff]
        %v513 = vld [vmem:[%s139 + $0xae8] sm:$0xff]
        %v514 = vld [vmem:[%s139 + $0xaf0] sm:$0xff]
        %v515 = vld [vmem:[%s139 + $0xaf8] sm:$0xff]
        %v516 = vld [vmem:[%s139 + $0xb00] sm:$0xff]
        %v517 = vld [vmem:[%s139 + $0xb08] sm:$0xff]
        %v518 = vld [vmem:[%s139 + $0xb10] sm:$0xff]
        %v519 = vld [vmem:[%s139 + $0xb18] sm:$0xff]
        %v520 = vld [vmem:[%s139 + $0xb20] sm:$0xff]
        %v521 = vld [vmem:[%s139 + $0xb28] sm:$0xff]
        %v522 = vld [vmem:[%s139 + $0xb30] sm:$0xff]
        %v523 = vld [vmem:[%s139 + $0xb38] sm:$0xff]
        %v524 = vld [vmem:[%s139 + $0xb40] sm:$0xff]
        %v525 = vld [vmem:[%s139 + $0xb48] sm:$0xff]
        %v526 = vld [vmem:[%s139 + $0xb50] sm:$0xff]
        %v527 = vld [vmem:[%s139 + $0xb58] sm:$0xff]
        %v528 = vld [vmem:[%s139 + $0xb60] sm:$0xff]
        %v529 = vld [vmem:[%s139 + $0xb68] sm:$0xff]
        %v530 = vld [vmem:[%s139 + $0xb70] sm:$0xff]
        %v531 = vld [vmem:[%s139 + $0xb78] sm:$0xff]
        %v532 = vld [vmem:[%s139 + $0xb80] sm:$0xff]
        %v533 = vld [vmem:[%s139 + $0xb88] sm:$0xff]
        %v534 = vld [vmem:[%s139 + $0xb90] sm:$0xff]
        %v535 = vld [vmem:[%s139 + $0xb98] sm:$0xff]
        %v536 = vld [vmem:[%s139 + $0xba0] sm:$0xff]
        %v537 = vld [vmem:[%s139 + $0xba8] sm:$0xff]
        %v538 = vld [vmem:[%s139 + $0xbb0] sm:$0xff]
        %v539 = vld [vmem:[%s139 + $0xbb8] sm:$0xff]
        %v540 = vld [vmem:[%s139 + $0xbc0] sm:$0xff]
        %v541 = vld [vmem:[%s139 + $0xbc8] sm:$0xff]
        %v542 = vld [vmem:[%s139 + $0xbd0] sm:$0xff]
        %v543 = vld [vmem:[%s139 + $0xbd8] sm:$0xff]
        %v544 = vld [vmem:[%s139 + $0xbe0] sm:$0xff]
        %v545 = vld [vmem:[%s139 + $0xbe8] sm:$0xff]
        %v546 = vld [vmem:[%s139 + $0xbf0] sm:$0xff]
        %v547 = vld [vmem:[%s139 + $0xbf8] sm:$0xff]
        %v548 = vld [vmem:[%s139 + $0xc00] sm:$0xff]
        %v549 = vld [vmem:[%s139 + $0xc08] sm:$0xff]
        %v550 = vld [vmem:[%s139 + $0xc10] sm:$0xff]
        %v551 = vld [vmem:[%s139 + $0xc18] sm:$0xff]
        %v552 = vld [vmem:[%s139 + $0xc20] sm:$0xff]
        %v553 = vld [vmem:[%s139 + $0xc28] sm:$0xff]
        %v554 = vld [vmem:[%s139 + $0xc30] sm:$0xff]
        %v555 = vld [vmem:[%s139 + $0xc38] sm:$0xff]
        %v556 = vld [vmem:[%s139 + $0xc40] sm:$0xff]
        %v557 = vld [vmem:[%s139 + $0xc48] sm:$0xff]
        %v558 = vld [vmem:[%s139 + $0xc50] sm:$0xff]
        %v559 = vld [vmem:[%s139 + $0xc58] sm:$0xff]
        %v560 = vld [vmem:[%s139 + $0xc60] sm:$0xff]
        %v561 = vld [vmem:[%s139 + $0xc68] sm:$0xff]
        %v562 = vld [vmem:[%s139 + $0xc70] sm:$0xff]
        %v563 = vld [vmem:[%s139 + $0xc78] sm:$0xff]
        %v564 = vld [vmem:[%s139 + $0xc80] sm:$0xff]
        %v565 = vld [vmem:[%s139 + $0xc88] sm:$0xff]
        %v566 = vld [vmem:[%s139 + $0xc90] sm:$0xff]
        %v567 = vld [vmem:[%s139 + $0xc98] sm:$0xff]
        %v568 = vld [vmem:[%s139 + $0xca0] sm:$0xff]
        %v569 = vld [vmem:[%s139 + $0xca8] sm:$0xff]
        %v570 = vld [vmem:[%s139 + $0xcb0] sm:$0xff]
        %v571 = vld [vmem:[%s139 + $0xcb8] sm:$0xff]
        %v572 = vld [vmem:[%s139 + $0xcc0] sm:$0xff]
        %v573 = vld [vmem:[%s139 + $0xcc8] sm:$0xff]
        %v574 = vld [vmem:[%s139 + $0xcd0] sm:$0xff]
        %v575 = vld [vmem:[%s139 + $0xcd8] sm:$0xff]
        %v576 = vld [vmem:[%s139 + $0xce0] sm:$0xff]
        %v577 = vld [vmem:[%s139 + $0xce8] sm:$0xff]
        %v578 = vld [vmem:[%s139 + $0xcf0] sm:$0xff]
        %v579 = vld [vmem:[%s139 + $0xcf8] sm:$0xff]
        %v580 = vld [vmem:[%s139 + $0xd00] sm:$0xff]
        %v581 = vld [vmem:[%s139 + $0xd08] sm:$0xff]
        %v582 = vld [vmem:[%s139 + $0xd10] sm:$0xff]
        %v583 = vld [vmem:[%s139 + $0xd18] sm:$0xff]
        %v584 = vld [vmem:[%s139 + $0xd20] sm:$0xff]
        %v585 = vld [vmem:[%s139 + $0xd28] sm:$0xff]
        %v586 = vld [vmem:[%s139 + $0xd30] sm:$0xff]
        %v587 = vld [vmem:[%s139 + $0xd38] sm:$0xff]
        %v588 = vld [vmem:[%s139 + $0xd40] sm:$0xff]
        %v589 = vld [vmem:[%s139 + $0xd48] sm:$0xff]
        %v590 = vld [vmem:[%s139 + $0xd50] sm:$0xff]
        %v591 = vld [vmem:[%s139 + $0xd58] sm:$0xff]
        %v592 = vld [vmem:[%s139 + $0xd60] sm:$0xff]
        %v593 = vld [vmem:[%s139 + $0xd68] sm:$0xff]
        %v594 = vld [vmem:[%s139 + $0xd70] sm:$0xff]
        %v595 = vld [vmem:[%s139 + $0xd78] sm:$0xff]
        %v596 = vld [vmem:[%s139 + $0xd80] sm:$0xff]
        %v597 = vld [vmem:[%s139 + $0xd88] sm:$0xff]
        %v598 = vld [vmem:[%s139 + $0xd90] sm:$0xff]
        %v599 = vld [vmem:[%s139 + $0xd98] sm:$0xff]
        %v600 = vld [vmem:[%s139 + $0xda0] sm:$0xff]
        %v601 = vld [vmem:[%s139 + $0xda8] sm:$0xff]
        %v602 = vld [vmem:[%s139 + $0xdb0] sm:$0xff]
        %v603 = vld [vmem:[%s139 + $0xdb8] sm:$0xff]
        %v604 = vld [vmem:[%s139 + $0xdc0] sm:$0xff]
        %v605 = vld [vmem:[%s139 + $0xdc8] sm:$0xff]
        %v606 = vld [vmem:[%s139 + $0xdd0] sm:$0xff]
        %v607 = vld [vmem:[%s139 + $0xdd8] sm:$0xff]
        %v608 = vld [vmem:[%s139 + $0xde0] sm:$0xff]
        %v609 = vld [vmem:[%s139 + $0xde8] sm:$0xff]
        %v610 = vld [vmem:[%s139 + $0xdf0] sm:$0xff]
        %v611 = vld [vmem:[%s139 + $0xdf8] sm:$0xff]
        %v612 = vld [vmem:[%s139 + $0xe00] sm:$0xff]
        %v613 = vld [vmem:[%s139 + $0xe08] sm:$0xff]
        %v614 = vld [vmem:[%s139 + $0xe10] sm:$0xff]
        %v615 = vld [vmem:[%s139 + $0xe18] sm:$0xff]
        %v616 = vld [vmem:[%s139 + $0xe20] sm:$0xff]
        %v617 = vld [vmem:[%s139 + $0xe28] sm:$0xff]
        %v618 = vld [vmem:[%s139 + $0xe30] sm:$0xff]
        %v619 = vld [vmem:[%s139 + $0xe38] sm:$0xff]
        %v620 = vld [vmem:[%s139 + $0xe40] sm:$0xff]
        %v621 = vld [vmem:[%s139 + $0xe48] sm:$0xff]
        %v622 = vld [vmem:[%s139 + $0xe50] sm:$0xff]
        %v623 = vld [vmem:[%s139 + $0xe58] sm:$0xff]
        %v624 = vld [vmem:[%s139 + $0xe60] sm:$0xff]
        %v625 = vld [vmem:[%s139 + $0xe68] sm:$0xff]
        %v626 = vld [vmem:[%s139 + $0xe70] sm:$0xff]
        %v627 = vld [vmem:[%s139 + $0xe78] sm:$0xff]
        %v628 = vld [vmem:[%s139 + $0xe80] sm:$0xff]
        %v629 = vld [vmem:[%s139 + $0xe88] sm:$0xff]
        %v630 = vld [vmem:[%s139 + $0xe90] sm:$0xff]
        %v631 = vld [vmem:[%s139 + $0xe98] sm:$0xff]
        %v632 = vld [vmem:[%s139 + $0xea0] sm:$0xff]
        %v633 = vld [vmem:[%s139 + $0xea8] sm:$0xff]
        %v634 = vld [vmem:[%s139 + $0xeb0] sm:$0xff]
        %v635 = vld [vmem:[%s139 + $0xeb8] sm:$0xff]
        %v636 = vld [vmem:[%s139 + $0xec0] sm:$0xff]
        %v637 = vld [vmem:[%s139 + $0xec8] sm:$0xff]
        %v638 = vld [vmem:[%s139 + $0xed0] sm:$0xff]
        %v639 = vld [vmem:[%s139 + $0xed8] sm:$0xff]
        %v640 = vld [vmem:[%s139 + $0xee0] sm:$0xff]
        %v641 = vld [vmem:[%s139 + $0xee8] sm:$0xff]
        %v642 = vld [vmem:[%s139 + $0xef0] sm:$0xff]
        %v643 = vld [vmem:[%s139 + $0xef8] sm:$0xff]
        %v644 = vld [vmem:[%s139 + $0xf00] sm:$0xff]
        %v645 = vld [vmem:[%s139 + $0xf08] sm:$0xff]
        %v646 = vld [vmem:[%s139 + $0xf10] sm:$0xff]
        %v647 = vld [vmem:[%s139 + $0xf18] sm:$0xff]
        %v648 = vld [vmem:[%s139 + $0xf20] sm:$0xff]
        %v649 = vld [vmem:[%s139 + $0xf28] sm:$0xff]
        %v650 = vld [vmem:[%s139 + $0xf30] sm:$0xff]
        %v651 = vld [vmem:[%s139 + $0xf38] sm:$0xff]
        %v652 = vld [vmem:[%s139 + $0xf40] sm:$0xff]
        %v653 = vld [vmem:[%s139 + $0xf48] sm:$0xff]
        %v654 = vld [vmem:[%s139 + $0xf50] sm:$0xff]
        %v655 = vld [vmem:[%s139 + $0xf58] sm:$0xff]
        %v656 = vld [vmem:[%s139 + $0xf60] sm:$0xff]
        %v657 = vld [vmem:[%s139 + $0xf68] sm:$0xff]
        %v658 = vld [vmem:[%s139 + $0xf70] sm:$0xff]
        %v659 = vld [vmem:[%s139 + $0xf78] sm:$0xff]
        %v660 = vld [vmem:[%s139 + $0xf80] sm:$0xff]
        %v661 = vld [vmem:[%s139 + $0xf88] sm:$0xff]
        %v662 = vld [vmem:[%s139 + $0xf90] sm:$0xff]
        %v663 = vld [vmem:[%s139 + $0xf98] sm:$0xff]
        %v664 = vld [vmem:[%s139 + $0xfa0] sm:$0xff]
        %v665 = vld [vmem:[%s139 + $0xfa8] sm:$0xff]
        %v666 = vld [vmem:[%s139 + $0xfb0] sm:$0xff]
        %v667 = vld [vmem:[%s139 + $0xfb8] sm:$0xff]
        %v668 = vld [vmem:[%s139 + $0xfc0] sm:$0xff]
        %v669 = vld [vmem:[%s139 + $0xfc8] sm:$0xff]
        %v670 = vld [vmem:[%s139 + $0xfd0] sm:$0xff]
        %v671 = vld [vmem:[%s139 + $0xfd8] sm:$0xff]
        %v672 = vld [vmem:[%s139 + $0xfe0] sm:$0xff]
        %v673 = vld [vmem:[%s139 + $0xfe8] sm:$0xff]
        %v674 = vld [vmem:[%s139 + $0xff0] sm:$0xff]
        %v675 = vld [vmem:[%s139 + $0xff8] sm:$0xff]
        %v676 = vsub.f32 %v164, 1.0
        %v677 = vsub.f32 %v165, 1.0
        %v678 = vsub.f32 %v166, 1.0
        %v679 = vsub.f32 %v167, 1.0
        %v680 = vsub.f32 %v168, 1.0
        %v681 = vsub.f32 %v169, 1.0
        %v682 = vsub.f32 %v170, 1.0
        %v683 = vsub.f32 %v171, 1.0
        %v684 = vsub.f32 %v172, 1.0
        %v685 = vsub.f32 %v173, 1.0
        %v686 = vsub.f32 %v174, 1.0
        %v687 = vsub.f32 %v175, 1.0
        %v688 = vsub.f32 %v176, 1.0
        %v689 = vsub.f32 %v177, 1.0
        %v690 = vsub.f32 %v178, 1.0
        %v691 = vsub.f32 %v179, 1.0
        %v692 = vsub.f32 %v180, 1.0
        %v693 = vsub.f32 %v181, 1.0
        %v694 = vsub.f32 %v182, 1.0
        %v695 = vsub.f32 %v183, 1.0
        %v696 = vsub.f32 %v184, 1.0
        %v697 = vsub.f32 %v185, 1.0
        %v698 = vsub.f32 %v186, 1.0
        %v699 = vsub.f32 %v187, 1.0
        %v700 = vsub.f32 %v188, 1.0
        %v701 = vsub.f32 %v189, 1.0
        %v702 = vsub.f32 %v190, 1.0
        %v703 = vsub.f32 %v191, 1.0
        %v704 = vsub.f32 %v192, 1.0
        %v705 = vsub.f32 %v193, 1.0
        %v706 = vsub.f32 %v194, 1.0
        %v707 = vsub.f32 %v195, 1.0
        %v708 = vsub.f32 %v196, 1.0
        %v709 = vsub.f32 %v197, 1.0
        %v710 = vsub.f32 %v198, 1.0
        %v711 = vsub.f32 %v199, 1.0
        %v712 = vsub.f32 %v200, 1.0
        %v713 = vsub.f32 %v201, 1.0
        %v714 = vsub.f32 %v202, 1.0
        %v715 = vsub.f32 %v203, 1.0
        %v716 = vsub.f32 %v204, 1.0
        %v717 = vsub.f32 %v205, 1.0
        %v718 = vsub.f32 %v206, 1.0
        %v719 = vsub.f32 %v207, 1.0
        %v720 = vsub.f32 %v208, 1.0
        %v721 = vsub.f32 %v209, 1.0
        %v722 = vsub.f32 %v210, 1.0
        %v723 = vsub.f32 %v211, 1.0
        %v724 = vsub.f32 %v212, 1.0
        %v725 = vsub.f32 %v213, 1.0
        %v726 = vsub.f32 %v214, 1.0
        %v727 = vsub.f32 %v215, 1.0
        %v728 = vsub.f32 %v216, 1.0
        %v729 = vsub.f32 %v217, 1.0
        %v730 = vsub.f32 %v218, 1.0
        %v731 = vsub.f32 %v219, 1.0
        %v732 = vsub.f32 %v220, 1.0
        %v733 = vsub.f32 %v221, 1.0
        %v734 = vsub.f32 %v222, 1.0
        %v735 = vsub.f32 %v223, 1.0
        %v736 = vsub.f32 %v224, 1.0
        %v737 = vsub.f32 %v225, 1.0
        %v738 = vsub.f32 %v226, 1.0
        %v739 = vsub.f32 %v227, 1.0
        %v740 = vsub.f32 %v228, 1.0
        %v741 = vsub.f32 %v229, 1.0
        %v742 = vsub.f32 %v230, 1.0
        %v743 = vsub.f32 %v231, 1.0
        %v744 = vsub.f32 %v232, 1.0
        %v745 = vsub.f32 %v233, 1.0
        %v746 = vsub.f32 %v234, 1.0
        %v747 = vsub.f32 %v235, 1.0
        %v748 = vsub.f32 %v236, 1.0
        %v749 = vsub.f32 %v237, 1.0
        %v750 = vsub.f32 %v238, 1.0
        %v751 = vsub.f32 %v239, 1.0
        %v752 = vsub.f32 %v240, 1.0
        %v753 = vsub.f32 %v241, 1.0
        %v754 = vsub.f32 %v242, 1.0
        %v755 = vsub.f32 %v243, 1.0
        %v756 = vsub.f32 %v244, 1.0
        %v757 = vsub.f32 %v245, 1.0
        %v758 = vsub.f32 %v246, 1.0
        %v759 = vsub.f32 %v247, 1.0
        %v760 = vsub.f32 %v248, 1.0
        %v761 = vsub.f32 %v249, 1.0
        %v762 = vsub.f32 %v250, 1.0
        %v763 = vsub.f32 %v251, 1.0
        %v764 = vsub.f32 %v252, 1.0
        %v765 = vsub.f32 %v253, 1.0
        %v766 = vsub.f32 %v254, 1.0
        %v767 = vsub.f32 %v255, 1.0
        %v768 = vsub.f32 %v256, 1.0
        %v769 = vsub.f32 %v257, 1.0
        %v770 = vsub.f32 %v258, 1.0
        %v771 = vsub.f32 %v259, 1.0
        %v772 = vsub.f32 %v260, 1.0
        %v773 = vsub.f32 %v261, 1.0
        %v774 = vsub.f32 %v262, 1.0
        %v775 = vsub.f32 %v263, 1.0
        %v776 = vsub.f32 %v264, 1.0
        %v777 = vsub.f32 %v265, 1.0
        %v778 = vsub.f32 %v266, 1.0
        %v779 = vsub.f32 %v267, 1.0
        %v780 = vsub.f32 %v268, 1.0
        %v781 = vsub.f32 %v269, 1.0
        %v782 = vsub.f32 %v270, 1.0
        %v783 = vsub.f32 %v271, 1.0
        %v784 = vsub.f32 %v272, 1.0
        %v785 = vsub.f32 %v273, 1.0
        %v786 = vsub.f32 %v274, 1.0
        %v787 = vsub.f32 %v275, 1.0
        %v788 = vsub.f32 %v276, 1.0
        %v789 = vsub.f32 %v277, 1.0
        %v790 = vsub.f32 %v278, 1.0
        %v791 = vsub.f32 %v279, 1.0
        %v792 = vsub.f32 %v280, 1.0
        %v793 = vsub.f32 %v281, 1.0
        %v794 = vsub.f32 %v282, 1.0
        %v795 = vsub.f32 %v283, 1.0
        %v796 = vsub.f32 %v284, 1.0
        %v797 = vsub.f32 %v285, 1.0
        %v798 = vsub.f32 %v286, 1.0
        %v799 = vsub.f32 %v287, 1.0
        %v800 = vsub.f32 %v288, 1.0
        %v801 = vsub.f32 %v289, 1.0
        %v802 = vsub.f32 %v290, 1.0
        %v803 = vsub.f32 %v291, 1.0
        %v804 = vsub.f32 %v292, 1.0
        %v805 = vsub.f32 %v293, 1.0
        %v806 = vsub.f32 %v294, 1.0
        %v807 = vsub.f32 %v295, 1.0
        %v808 = vsub.f32 %v296, 1.0
        %v809 = vsub.f32 %v297, 1.0
        %v810 = vsub.f32 %v298, 1.0
        %v811 = vsub.f32 %v299, 1.0
        %v812 = vsub.f32 %v300, 1.0
        %v813 = vsub.f32 %v301, 1.0
        %v814 = vsub.f32 %v302, 1.0
        %v815 = vsub.f32 %v303, 1.0
        %v816 = vsub.f32 %v304, 1.0
        %v817 = vsub.f32 %v305, 1.0
        %v818 = vsub.f32 %v306, 1.0
        %v819 = vsub.f32 %v307, 1.0
        %v820 = vsub.f32 %v308, 1.0
        %v821 = vsub.f32 %v309, 1.0
        %v822 = vsub.f32 %v310, 1.0
        %v823 = vsub.f32 %v311, 1.0
        %v824 = vsub.f32 %v312, 1.0
        %v825 = vsub.f32 %v313, 1.0
        %v826 = vsub.f32 %v314, 1.0
        %v827 = vsub.f32 %v315, 1.0
        %v828 = vsub.f32 %v316, 1.0
        %v829 = vsub.f32 %v317, 1.0
        %v830 = vsub.f32 %v318, 1.0
        %v831 = vsub.f32 %v319, 1.0
        %v832 = vsub.f32 %v320, 1.0
        %v833 = vsub.f32 %v321, 1.0
        %v834 = vsub.f32 %v322, 1.0
        %v835 = vsub.f32 %v323, 1.0
        %v836 = vsub.f32 %v324, 1.0
        %v837 = vsub.f32 %v325, 1.0
        %v838 = vsub.f32 %v326, 1.0
        %v839 = vsub.f32 %v327, 1.0
        %v840 = vsub.f32 %v328, 1.0
        %v841 = vsub.f32 %v329, 1.0
        %v842 = vsub.f32 %v330, 1.0
        %v843 = vsub.f32 %v331, 1.0
        %v844 = vsub.f32 %v332, 1.0
        %v845 = vsub.f32 %v333, 1.0
        %v846 = vsub.f32 %v334, 1.0
        %v847 = vsub.f32 %v335, 1.0
        %v848 = vsub.f32 %v336, 1.0
        %v849 = vsub.f32 %v337, 1.0
        %v850 = vsub.f32 %v338, 1.0
        %v851 = vsub.f32 %v339, 1.0
        %v852 = vsub.f32 %v340, 1.0
        %v853 = vsub.f32 %v341, 1.0
        %v854 = vsub.f32 %v342, 1.0
        %v855 = vsub.f32 %v343, 1.0
        %v856 = vsub.f32 %v344, 1.0
        %v857 = vsub.f32 %v345, 1.0
        %v858 = vsub.f32 %v346, 1.0
        %v859 = vsub.f32 %v347, 1.0
        %v860 = vsub.f32 %v348, 1.0
        %v861 = vsub.f32 %v349, 1.0
        %v862 = vsub.f32 %v350, 1.0
        %v863 = vsub.f32 %v351, 1.0
        %v864 = vsub.f32 %v352, 1.0
        %v865 = vsub.f32 %v353, 1.0
        %v866 = vsub.f32 %v354, 1.0
        %v867 = vsub.f32 %v355, 1.0
        %v868 = vsub.f32 %v356, 1.0
        %v869 = vsub.f32 %v357, 1.0
        %v870 = vsub.f32 %v358, 1.0
        %v871 = vsub.f32 %v359, 1.0
        %v872 = vsub.f32 %v360, 1.0
        %v873 = vsub.f32 %v361, 1.0
        %v874 = vsub.f32 %v362, 1.0
        %v875 = vsub.f32 %v363, 1.0
        %v876 = vsub.f32 %v364, 1.0
        %v877 = vsub.f32 %v365, 1.0
        %v878 = vsub.f32 %v366, 1.0
        %v879 = vsub.f32 %v367, 1.0
        %v880 = vsub.f32 %v368, 1.0
        %v881 = vsub.f32 %v369, 1.0
        %v882 = vsub.f32 %v370, 1.0
        %v883 = vsub.f32 %v371, 1.0
        %v884 = vsub.f32 %v372, 1.0
        %v885 = vsub.f32 %v373, 1.0
        %v886 = vsub.f32 %v374, 1.0
        %v887 = vsub.f32 %v375, 1.0
        %v888 = vsub.f32 %v376, 1.0
        %v889 = vsub.f32 %v377, 1.0
        %v890 = vsub.f32 %v378, 1.0
        %v891 = vsub.f32 %v379, 1.0
        %v892 = vsub.f32 %v380, 1.0
        %v893 = vsub.f32 %v381, 1.0
        %v894 = vsub.f32 %v382, 1.0
        %v895 = vsub.f32 %v383, 1.0
        %v896 = vsub.f32 %v384, 1.0
        %v897 = vsub.f32 %v385, 1.0
        %v898 = vsub.f32 %v386, 1.0
        %v899 = vsub.f32 %v387, 1.0
        %v900 = vsub.f32 %v388, 1.0
        %v901 = vsub.f32 %v389, 1.0
        %v902 = vsub.f32 %v390, 1.0
        %v903 = vsub.f32 %v391, 1.0
        %v904 = vsub.f32 %v392, 1.0
        %v905 = vsub.f32 %v393, 1.0
        %v906 = vsub.f32 %v394, 1.0
        %v907 = vsub.f32 %v395, 1.0
        %v908 = vsub.f32 %v396, 1.0
        %v909 = vsub.f32 %v397, 1.0
        %v910 = vsub.f32 %v398, 1.0
        %v911 = vsub.f32 %v399, 1.0
        %v912 = vsub.f32 %v400, 1.0
        %v913 = vsub.f32 %v401, 1.0
        %v914 = vsub.f32 %v402, 1.0
        %v915 = vsub.f32 %v403, 1.0
        %v916 = vsub.f32 %v404, 1.0
        %v917 = vsub.f32 %v405, 1.0
        %v918 = vsub.f32 %v406, 1.0
        %v919 = vsub.f32 %v407, 1.0
        %v920 = vsub.f32 %v408, 1.0
        %v921 = vsub.f32 %v409, 1.0
        %v922 = vsub.f32 %v410, 1.0
        %v923 = vsub.f32 %v411, 1.0
        %v924 = vsub.f32 %v412, 1.0
        %v925 = vsub.f32 %v413, 1.0
        %v926 = vsub.f32 %v414, 1.0
        %v927 = vsub.f32 %v415, 1.0
        %v928 = vsub.f32 %v416, 1.0
        %v929 = vsub.f32 %v417, 1.0
        %v930 = vsub.f32 %v418, 1.0
        %v931 = vsub.f32 %v419, 1.0
        %v932 = vsub.f32 %v420, 1.0
        %v933 = vsub.f32 %v421, 1.0
        %v934 = vsub.f32 %v422, 1.0
        %v935 = vsub.f32 %v423, 1.0
        %v936 = vsub.f32 %v424, 1.0
        %v937 = vsub.f32 %v425, 1.0
        %v938 = vsub.f32 %v426, 1.0
        %v939 = vsub.f32 %v427, 1.0
        %v940 = vsub.f32 %v428, 1.0
        %v941 = vsub.f32 %v429, 1.0
        %v942 = vsub.f32 %v430, 1.0
        %v943 = vsub.f32 %v431, 1.0
        %v944 = vsub.f32 %v432, 1.0
        %v945 = vsub.f32 %v433, 1.0
        %v946 = vsub.f32 %v434, 1.0
        %v947 = vsub.f32 %v435, 1.0
        %v948 = vsub.f32 %v436, 1.0
        %v949 = vsub.f32 %v437, 1.0
        %v950 = vsub.f32 %v438, 1.0
        %v951 = vsub.f32 %v439, 1.0
        %v952 = vsub.f32 %v440, 1.0
        %v953 = vsub.f32 %v441, 1.0
        %v954 = vsub.f32 %v442, 1.0
        %v955 = vsub.f32 %v443, 1.0
        %v956 = vsub.f32 %v444, 1.0
        %v957 = vsub.f32 %v445, 1.0
        %v958 = vsub.f32 %v446, 1.0
        %v959 = vsub.f32 %v447, 1.0
        %v960 = vsub.f32 %v448, 1.0
        %v961 = vsub.f32 %v449, 1.0
        %v962 = vsub.f32 %v450, 1.0
        %v963 = vsub.f32 %v451, 1.0
        %v964 = vsub.f32 %v452, 1.0
        %v965 = vsub.f32 %v453, 1.0
        %v966 = vsub.f32 %v454, 1.0
        %v967 = vsub.f32 %v455, 1.0
        %v968 = vsub.f32 %v456, 1.0
        %v969 = vsub.f32 %v457, 1.0
        %v970 = vsub.f32 %v458, 1.0
        %v971 = vsub.f32 %v459, 1.0
        %v972 = vsub.f32 %v460, 1.0
        %v973 = vsub.f32 %v461, 1.0
        %v974 = vsub.f32 %v462, 1.0
        %v975 = vsub.f32 %v463, 1.0
        %v976 = vsub.f32 %v464, 1.0
        %v977 = vsub.f32 %v465, 1.0
        %v978 = vsub.f32 %v466, 1.0
        %v979 = vsub.f32 %v467, 1.0
        %v980 = vsub.f32 %v468, 1.0
        %v981 = vsub.f32 %v469, 1.0
        %v982 = vsub.f32 %v470, 1.0
        %v983 = vsub.f32 %v471, 1.0
        %v984 = vsub.f32 %v472, 1.0
        %v985 = vsub.f32 %v473, 1.0
        %v986 = vsub.f32 %v474, 1.0
        %v987 = vsub.f32 %v475, 1.0
        %v988 = vsub.f32 %v476, 1.0
        %v989 = vsub.f32 %v477, 1.0
        %v990 = vsub.f32 %v478, 1.0
        %v991 = vsub.f32 %v479, 1.0
        %v992 = vsub.f32 %v480, 1.0
        %v993 = vsub.f32 %v481, 1.0
        %v994 = vsub.f32 %v482, 1.0
        %v995 = vsub.f32 %v483, 1.0
        %v996 = vsub.f32 %v484, 1.0
        %v997 = vsub.f32 %v485, 1.0
        %v998 = vsub.f32 %v486, 1.0
        %v999 = vsub.f32 %v487, 1.0
        %v1000 = vsub.f32 %v488, 1.0
        %v1001 = vsub.f32 %v489, 1.0
        %v1002 = vsub.f32 %v490, 1.0
        %v1003 = vsub.f32 %v491, 1.0
        %v1004 = vsub.f32 %v492, 1.0
        %v1005 = vsub.f32 %v493, 1.0
        %v1006 = vsub.f32 %v494, 1.0
        %v1007 = vsub.f32 %v495, 1.0
        %v1008 = vsub.f32 %v496, 1.0
        %v1009 = vsub.f32 %v497, 1.0
        %v1010 = vsub.f32 %v498, 1.0
        %v1011 = vsub.f32 %v499, 1.0
        %v1012 = vsub.f32 %v500, 1.0
        %v1013 = vsub.f32 %v501, 1.0
        %v1014 = vsub.f32 %v502, 1.0
        %v1015 = vsub.f32 %v503, 1.0
        %v1016 = vsub.f32 %v504, 1.0
        %v1017 = vsub.f32 %v505, 1.0
        %v1018 = vsub.f32 %v506, 1.0
        %v1019 = vsub.f32 %v507, 1.0
        %v1020 = vsub.f32 %v508, 1.0
        %v1021 = vsub.f32 %v509, 1.0
        %v1022 = vsub.f32 %v510, 1.0
        %v1023 = vsub.f32 %v511, 1.0
        %v1024 = vsub.f32 %v512, 1.0
        %v1025 = vsub.f32 %v513, 1.0
        %v1026 = vsub.f32 %v514, 1.0
        %v1027 = vsub.f32 %v515, 1.0
        %v1028 = vsub.f32 %v516, 1.0
        %v1029 = vsub.f32 %v517, 1.0
        %v1030 = vsub.f32 %v518, 1.0
        %v1031 = vsub.f32 %v519, 1.0
        %v1032 = vsub.f32 %v520, 1.0
        %v1033 = vsub.f32 %v521, 1.0
        %v1034 = vsub.f32 %v522, 1.0
        %v1035 = vsub.f32 %v523, 1.0
        %v1036 = vsub.f32 %v524, 1.0
        %v1037 = vsub.f32 %v525, 1.0
        %v1038 = vsub.f32 %v526, 1.0
        %v1039 = vsub.f32 %v527, 1.0
        %v1040 = vsub.f32 %v528, 1.0
        %v1041 = vsub.f32 %v529, 1.0
        %v1042 = vsub.f32 %v530, 1.0
        %v1043 = vsub.f32 %v531, 1.0
        %v1044 = vsub.f32 %v532, 1.0
        %v1045 = vsub.f32 %v533, 1.0
        %v1046 = vsub.f32 %v534, 1.0
        %v1047 = vsub.f32 %v535, 1.0
        %v1048 = vsub.f32 %v536, 1.0
        %v1049 = vsub.f32 %v537, 1.0
        %v1050 = vsub.f32 %v538, 1.0
        %v1051 = vsub.f32 %v539, 1.0
        %v1052 = vsub.f32 %v540, 1.0
        %v1053 = vsub.f32 %v541, 1.0
        %v1054 = vsub.f32 %v542, 1.0
        %v1055 = vsub.f32 %v543, 1.0
        %v1056 = vsub.f32 %v544, 1.0
        %v1057 = vsub.f32 %v545, 1.0
        %v1058 = vsub.f32 %v546, 1.0
        %v1059 = vsub.f32 %v547, 1.0
        %v1060 = vsub.f32 %v548, 1.0
        %v1061 = vsub.f32 %v549, 1.0
        %v1062 = vsub.f32 %v550, 1.0
        %v1063 = vsub.f32 %v551, 1.0
        %v1064 = vsub.f32 %v552, 1.0
        %v1065 = vsub.f32 %v553, 1.0
        %v1066 = vsub.f32 %v554, 1.0
        %v1067 = vsub.f32 %v555, 1.0
        %v1068 = vsub.f32 %v556, 1.0
        %v1069 = vsub.f32 %v557, 1.0
        %v1070 = vsub.f32 %v558, 1.0
        %v1071 = vsub.f32 %v559, 1.0
        %v1072 = vsub.f32 %v560, 1.0
        %v1073 = vsub.f32 %v561, 1.0
        %v1074 = vsub.f32 %v562, 1.0
        %v1075 = vsub.f32 %v563, 1.0
        %v1076 = vsub.f32 %v564, 1.0
        %v1077 = vsub.f32 %v565, 1.0
        %v1078 = vsub.f32 %v566, 1.0
        %v1079 = vsub.f32 %v567, 1.0
        %v1080 = vsub.f32 %v568, 1.0
        %v1081 = vsub.f32 %v569, 1.0
        %v1082 = vsub.f32 %v570, 1.0
        %v1083 = vsub.f32 %v571, 1.0
        %v1084 = vsub.f32 %v572, 1.0
        %v1085 = vsub.f32 %v573, 1.0
        %v1086 = vsub.f32 %v574, 1.0
        %v1087 = vsub.f32 %v575, 1.0
        %v1088 = vsub.f32 %v576, 1.0
        %v1089 = vsub.f32 %v577, 1.0
        %v1090 = vsub.f32 %v578, 1.0
        %v1091 = vsub.f32 %v579, 1.0
        %v1092 = vsub.f32 %v580, 1.0
        %v1093 = vsub.f32 %v581, 1.0
        %v1094 = vsub.f32 %v582, 1.0
        %v1095 = vsub.f32 %v583, 1.0
        %v1096 = vsub.f32 %v584, 1.0
        %v1097 = vsub.f32 %v585, 1.0
        %v1098 = vsub.f32 %v586, 1.0
        %v1099 = vsub.f32 %v587, 1.0
        %v1100 = vsub.f32 %v588, 1.0
        %v1101 = vsub.f32 %v589, 1.0
        %v1102 = vsub.f32 %v590, 1.0
        %v1103 = vsub.f32 %v591, 1.0
        %v1104 = vsub.f32 %v592, 1.0
        %v1105 = vsub.f32 %v593, 1.0
        %v1106 = vsub.f32 %v594, 1.0
        %v1107 = vsub.f32 %v595, 1.0
        %v1108 = vsub.f32 %v596, 1.0
        %v1109 = vsub.f32 %v597, 1.0
        %v1110 = vsub.f32 %v598, 1.0
        %v1111 = vsub.f32 %v599, 1.0
        %v1112 = vsub.f32 %v600, 1.0
        %v1113 = vsub.f32 %v601, 1.0
        %v1114 = vsub.f32 %v602, 1.0
        %v1115 = vsub.f32 %v603, 1.0
        %v1116 = vsub.f32 %v604, 1.0
        %v1117 = vsub.f32 %v605, 1.0
        %v1118 = vsub.f32 %v606, 1.0
        %v1119 = vsub.f32 %v607, 1.0
        %v1120 = vsub.f32 %v608, 1.0
        %v1121 = vsub.f32 %v609, 1.0
        %v1122 = vsub.f32 %v610, 1.0
        %v1123 = vsub.f32 %v611, 1.0
        %v1124 = vsub.f32 %v612, 1.0
        %v1125 = vsub.f32 %v613, 1.0
        %v1126 = vsub.f32 %v614, 1.0
        %v1127 = vsub.f32 %v615, 1.0
        %v1128 = vsub.f32 %v616, 1.0
        %v1129 = vsub.f32 %v617, 1.0
        %v1130 = vsub.f32 %v618, 1.0
        %v1131 = vsub.f32 %v619, 1.0
        %v1132 = vsub.f32 %v620, 1.0
        %v1133 = vsub.f32 %v621, 1.0
        %v1134 = vsub.f32 %v622, 1.0
        %v1135 = vsub.f32 %v623, 1.0
        %v1136 = vsub.f32 %v624, 1.0
        %v1137 = vsub.f32 %v625, 1.0
        %v1138 = vsub.f32 %v626, 1.0
        %v1139 = vsub.f32 %v627, 1.0
        %v1140 = vsub.f32 %v628, 1.0
        %v1141 = vsub.f32 %v629, 1.0
        %v1142 = vsub.f32 %v630, 1.0
        %v1143 = vsub.f32 %v631, 1.0
        %v1144 = vsub.f32 %v632, 1.0
        %v1145 = vsub.f32 %v633, 1.0
        %v1146 = vsub.f32 %v634, 1.0
        %v1147 = vsub.f32 %v635, 1.0
        %v1148 = vsub.f32 %v636, 1.0
        %v1149 = vsub.f32 %v637, 1.0
        %v1150 = vsub.f32 %v638, 1.0
        %v1151 = vsub.f32 %v639, 1.0
        %v1152 = vsub.f32 %v640, 1.0
        %v1153 = vsub.f32 %v641, 1.0
        %v1154 = vsub.f32 %v642, 1.0
        %v1155 = vsub.f32 %v643, 1.0
        %v1156 = vsub.f32 %v644, 1.0
        %v1157 = vsub.f32 %v645, 1.0
        %v1158 = vsub.f32 %v646, 1.0
        %v1159 = vsub.f32 %v647, 1.0
        %v1160 = vsub.f32 %v648, 1.0
        %v1161 = vsub.f32 %v649, 1.0
        %v1162 = vsub.f32 %v650, 1.0
        %v1163 = vsub.f32 %v651, 1.0
        %v1164 = vsub.f32 %v652, 1.0
        %v1165 = vsub.f32 %v653, 1.0
        %v1166 = vsub.f32 %v654, 1.0
        %v1167 = vsub.f32 %v655, 1.0
        %v1168 = vsub.f32 %v656, 1.0
        %v1169 = vsub.f32 %v657, 1.0
        %v1170 = vsub.f32 %v658, 1.0
        %v1171 = vsub.f32 %v659, 1.0
        %v1172 = vsub.f32 %v660, 1.0
        %v1173 = vsub.f32 %v661, 1.0
        %v1174 = vsub.f32 %v662, 1.0
        %v1175 = vsub.f32 %v663, 1.0
        %v1176 = vsub.f32 %v664, 1.0
        %v1177 = vsub.f32 %v665, 1.0
        %v1178 = vsub.f32 %v666, 1.0
        %v1179 = vsub.f32 %v667, 1.0
        %v1180 = vsub.f32 %v668, 1.0
        %v1181 = vsub.f32 %v669, 1.0
        %v1182 = vsub.f32 %v670, 1.0
        %v1183 = vsub.f32 %v671, 1.0
        %v1184 = vsub.f32 %v672, 1.0
        %v1185 = vsub.f32 %v673, 1.0
        %v1186 = vsub.f32 %v674, 1.0
        %v1187 = vsub.f32 %v675, 1.0
        %v1188 = vmul.f32 %v676, %v676
        %v1189 = vmul.f32 %v677, %v677
        %v1190 = vmul.f32 %v678, %v678
        %v1191 = vmul.f32 %v679, %v679
        %v1192 = vmul.f32 %v680, %v680
        %v1193 = vmul.f32 %v681, %v681
        %v1194 = vmul.f32 %v682, %v682
        %v1195 = vmul.f32 %v683, %v683
        %v1196 = vmul.f32 %v684, %v684
        %v1197 = vmul.f32 %v685, %v685
        %v1198 = vmul.f32 %v686, %v686
        %v1199 = vmul.f32 %v687, %v687
        %v1200 = vmul.f32 %v688, %v688
        %v1201 = vmul.f32 %v689, %v689
        %v1202 = vmul.f32 %v690, %v690
        %v1203 = vmul.f32 %v691, %v691
        %v1204 = vmul.f32 %v692, %v692
        %v1205 = vmul.f32 %v693, %v693
        %v1206 = vmul.f32 %v694, %v694
        %v1207 = vmul.f32 %v695, %v695
        %v1208 = vmul.f32 %v696, %v696
        %v1209 = vmul.f32 %v697, %v697
        %v1210 = vmul.f32 %v698, %v698
        %v1211 = vmul.f32 %v699, %v699
        %v1212 = vmul.f32 %v700, %v700
        %v1213 = vmul.f32 %v701, %v701
        %v1214 = vmul.f32 %v702, %v702
        %v1215 = vmul.f32 %v703, %v703
        %v1216 = vmul.f32 %v704, %v704
        %v1217 = vmul.f32 %v705, %v705
        %v1218 = vmul.f32 %v706, %v706
        %v1219 = vmul.f32 %v707, %v707
        %v1220 = vmul.f32 %v708, %v708
        %v1221 = vmul.f32 %v709, %v709
        %v1222 = vmul.f32 %v710, %v710
        %v1223 = vmul.f32 %v711, %v711
        %v1224 = vmul.f32 %v712, %v712
        %v1225 = vmul.f32 %v713, %v713
        %v1226 = vmul.f32 %v714, %v714
        %v1227 = vmul.f32 %v715, %v715
        %v1228 = vmul.f32 %v716, %v716
        %v1229 = vmul.f32 %v717, %v717
        %v1230 = vmul.f32 %v718, %v718
        %v1231 = vmul.f32 %v719, %v719
        %v1232 = vmul.f32 %v720, %v720
        %v1233 = vmul.f32 %v721, %v721
        %v1234 = vmul.f32 %v722, %v722
        %v1235 = vmul.f32 %v723, %v723
        %v1236 = vmul.f32 %v724, %v724
        %v1237 = vmul.f32 %v725, %v725
        %v1238 = vmul.f32 %v726, %v726
        %v1239 = vmul.f32 %v727, %v727
        %v1240 = vmul.f32 %v728, %v728
        %v1241 = vmul.f32 %v729, %v729
        %v1242 = vmul.f32 %v730, %v730
        %v1243 = vmul.f32 %v731, %v731
        %v1244 = vmul.f32 %v732, %v732
        %v1245 = vmul.f32 %v733, %v733
        %v1246 = vmul.f32 %v734, %v734
        %v1247 = vmul.f32 %v735, %v735
        %v1248 = vmul.f32 %v736, %v736
        %v1249 = vmul.f32 %v737, %v737
        %v1250 = vmul.f32 %v738, %v738
        %v1251 = vmul.f32 %v739, %v739
        %v1252 = vmul.f32 %v740, %v740
        %v1253 = vmul.f32 %v741, %v741
        %v1254 = vmul.f32 %v742, %v742
        %v1255 = vmul.f32 %v743, %v743
        %v1256 = vmul.f32 %v744, %v744
        %v1257 = vmul.f32 %v745, %v745
        %v1258 = vmul.f32 %v746, %v746
        %v1259 = vmul.f32 %v747, %v747
        %v1260 = vmul.f32 %v748, %v748
        %v1261 = vmul.f32 %v749, %v749
        %v1262 = vmul.f32 %v750, %v750
        %v1263 = vmul.f32 %v751, %v751
        %v1264 = vmul.f32 %v752, %v752
        %v1265 = vmul.f32 %v753, %v753
        %v1266 = vmul.f32 %v754, %v754
        %v1267 = vmul.f32 %v755, %v755
        %v1268 = vmul.f32 %v756, %v756
        %v1269 = vmul.f32 %v757, %v757
        %v1270 = vmul.f32 %v758, %v758
        %v1271 = vmul.f32 %v759, %v759
        %v1272 = vmul.f32 %v760, %v760
        %v1273 = vmul.f32 %v761, %v761
        %v1274 = vmul.f32 %v762, %v762
        %v1275 = vmul.f32 %v763, %v763
        %v1276 = vmul.f32 %v764, %v764
        %v1277 = vmul.f32 %v765, %v765
        %v1278 = vmul.f32 %v766, %v766
        %v1279 = vmul.f32 %v767, %v767
        %v1280 = vmul.f32 %v768, %v768
        %v1281 = vmul.f32 %v769, %v769
        %v1282 = vmul.f32 %v770, %v770
        %v1283 = vmul.f32 %v771, %v771
        %v1284 = vmul.f32 %v772, %v772
        %v1285 = vmul.f32 %v773, %v773
        %v1286 = vmul.f32 %v774, %v774
        %v1287 = vmul.f32 %v775, %v775
        %v1288 = vmul.f32 %v776, %v776
        %v1289 = vmul.f32 %v777, %v777
        %v1290 = vmul.f32 %v778, %v778
        %v1291 = vmul.f32 %v779, %v779
        %v1292 = vmul.f32 %v780, %v780
        %v1293 = vmul.f32 %v781, %v781
        %v1294 = vmul.f32 %v782, %v782
        %v1295 = vmul.f32 %v783, %v783
        %v1296 = vmul.f32 %v784, %v784
        %v1297 = vmul.f32 %v785, %v785
        %v1298 = vmul.f32 %v786, %v786
        %v1299 = vmul.f32 %v787, %v787
        %v1300 = vmul.f32 %v788, %v788
        %v1301 = vmul.f32 %v789, %v789
        %v1302 = vmul.f32 %v790, %v790
        %v1303 = vmul.f32 %v791, %v791
        %v1304 = vmul.f32 %v792, %v792
        %v1305 = vmul.f32 %v793, %v793
        %v1306 = vmul.f32 %v794, %v794
        %v1307 = vmul.f32 %v795, %v795
        %v1308 = vmul.f32 %v796, %v796
        %v1309 = vmul.f32 %v797, %v797
        %v1310 = vmul.f32 %v798, %v798
        %v1311 = vmul.f32 %v799, %v799
        %v1312 = vmul.f32 %v800, %v800
        %v1313 = vmul.f32 %v801, %v801
        %v1314 = vmul.f32 %v802, %v802
        %v1315 = vmul.f32 %v803, %v803
        %v1316 = vmul.f32 %v804, %v804
        %v1317 = vmul.f32 %v805, %v805
        %v1318 = vmul.f32 %v806, %v806
        %v1319 = vmul.f32 %v807, %v807
        %v1320 = vmul.f32 %v808, %v808
        %v1321 = vmul.f32 %v809, %v809
        %v1322 = vmul.f32 %v810, %v810
        %v1323 = vmul.f32 %v811, %v811
        %v1324 = vmul.f32 %v812, %v812
        %v1325 = vmul.f32 %v813, %v813
        %v1326 = vmul.f32 %v814, %v814
        %v1327 = vmul.f32 %v815, %v815
        %v1328 = vmul.f32 %v816, %v816
        %v1329 = vmul.f32 %v817, %v817
        %v1330 = vmul.f32 %v818, %v818
        %v1331 = vmul.f32 %v819, %v819
        %v1332 = vmul.f32 %v820, %v820
        %v1333 = vmul.f32 %v821, %v821
        %v1334 = vmul.f32 %v822, %v822
        %v1335 = vmul.f32 %v823, %v823
        %v1336 = vmul.f32 %v824, %v824
        %v1337 = vmul.f32 %v825, %v825
        %v1338 = vmul.f32 %v826, %v826
        %v1339 = vmul.f32 %v827, %v827
        %v1340 = vmul.f32 %v828, %v828
        %v1341 = vmul.f32 %v829, %v829
        %v1342 = vmul.f32 %v830, %v830
        %v1343 = vmul.f32 %v831, %v831
        %v1344 = vmul.f32 %v832, %v832
        %v1345 = vmul.f32 %v833, %v833
        %v1346 = vmul.f32 %v834, %v834
        %v1347 = vmul.f32 %v835, %v835
        %v1348 = vmul.f32 %v836, %v836
        %v1349 = vmul.f32 %v837, %v837
        %v1350 = vmul.f32 %v838, %v838
        %v1351 = vmul.f32 %v839, %v839
        %v1352 = vmul.f32 %v840, %v840
        %v1353 = vmul.f32 %v841, %v841
        %v1354 = vmul.f32 %v842, %v842
        %v1355 = vmul.f32 %v843, %v843
        %v1356 = vmul.f32 %v844, %v844
        %v1357 = vmul.f32 %v845, %v845
        %v1358 = vmul.f32 %v846, %v846
        %v1359 = vmul.f32 %v847, %v847
        %v1360 = vmul.f32 %v848, %v848
        %v1361 = vmul.f32 %v849, %v849
        %v1362 = vmul.f32 %v850, %v850
        %v1363 = vmul.f32 %v851, %v851
        %v1364 = vmul.f32 %v852, %v852
        %v1365 = vmul.f32 %v853, %v853
        %v1366 = vmul.f32 %v854, %v854
        %v1367 = vmul.f32 %v855, %v855
        %v1368 = vmul.f32 %v856, %v856
        %v1369 = vmul.f32 %v857, %v857
        %v1370 = vmul.f32 %v858, %v858
        %v1371 = vmul.f32 %v859, %v859
        %v1372 = vmul.f32 %v860, %v860
        %v1373 = vmul.f32 %v861, %v861
        %v1374 = vmul.f32 %v862, %v862
        %v1375 = vmul.f32 %v863, %v863
        %v1376 = vmul.f32 %v864, %v864
        %v1377 = vmul.f32 %v865, %v865
        %v1378 = vmul.f32 %v866, %v866
        %v1379 = vmul.f32 %v867, %v867
        %v1380 = vmul.f32 %v868, %v868
        %v1381 = vmul.f32 %v869, %v869
        %v1382 = vmul.f32 %v870, %v870
        %v1383 = vmul.f32 %v871, %v871
        %v1384 = vmul.f32 %v872, %v872
        %v1385 = vmul.f32 %v873, %v873
        %v1386 = vmul.f32 %v874, %v874
        %v1387 = vmul.f32 %v875, %v875
        %v1388 = vmul.f32 %v876, %v876
        %v1389 = vmul.f32 %v877, %v877
        %v1390 = vmul.f32 %v878, %v878
        %v1391 = vmul.f32 %v879, %v879
        %v1392 = vmul.f32 %v880, %v880
        %v1393 = vmul.f32 %v881, %v881
        %v1394 = vmul.f32 %v882, %v882
        %v1395 = vmul.f32 %v883, %v883
        %v1396 = vmul.f32 %v884, %v884
        %v1397 = vmul.f32 %v885, %v885
        %v1398 = vmul.f32 %v886, %v886
        %v1399 = vmul.f32 %v887, %v887
        %v1400 = vmul.f32 %v888, %v888
        %v1401 = vmul.f32 %v889, %v889
        %v1402 = vmul.f32 %v890, %v890
        %v1403 = vmul.f32 %v891, %v891
        %v1404 = vmul.f32 %v892, %v892
        %v1405 = vmul.f32 %v893, %v893
        %v1406 = vmul.f32 %v894, %v894
        %v1407 = vmul.f32 %v895, %v895
        %v1408 = vmul.f32 %v896, %v896
        %v1409 = vmul.f32 %v897, %v897
        %v1410 = vmul.f32 %v898, %v898
        %v1411 = vmul.f32 %v899, %v899
        %v1412 = vmul.f32 %v900, %v900
        %v1413 = vmul.f32 %v901, %v901
        %v1414 = vmul.f32 %v902, %v902
        %v1415 = vmul.f32 %v903, %v903
        %v1416 = vmul.f32 %v904, %v904
        %v1417 = vmul.f32 %v905, %v905
        %v1418 = vmul.f32 %v906, %v906
        %v1419 = vmul.f32 %v907, %v907
        %v1420 = vmul.f32 %v908, %v908
        %v1421 = vmul.f32 %v909, %v909
        %v1422 = vmul.f32 %v910, %v910
        %v1423 = vmul.f32 %v911, %v911
        %v1424 = vmul.f32 %v912, %v912
        %v1425 = vmul.f32 %v913, %v913
        %v1426 = vmul.f32 %v914, %v914
        %v1427 = vmul.f32 %v915, %v915
        %v1428 = vmul.f32 %v916, %v916
        %v1429 = vmul.f32 %v917, %v917
        %v1430 = vmul.f32 %v918, %v918
        %v1431 = vmul.f32 %v919, %v919
        %v1432 = vmul.f32 %v920, %v920
        %v1433 = vmul.f32 %v921, %v921
        %v1434 = vmul.f32 %v922, %v922
        %v1435 = vmul.f32 %v923, %v923
        %v1436 = vmul.f32 %v924, %v924
        %v1437 = vmul.f32 %v925, %v925
        %v1438 = vmul.f32 %v926, %v926
        %v1439 = vmul.f32 %v927, %v927
        %v1440 = vmul.f32 %v928, %v928
        %v1441 = vmul.f32 %v929, %v929
        %v1442 = vmul.f32 %v930, %v930
        %v1443 = vmul.f32 %v931, %v931
        %v1444 = vmul.f32 %v932, %v932
        %v1445 = vmul.f32 %v933, %v933
        %v1446 = vmul.f32 %v934, %v934
        %v1447 = vmul.f32 %v935, %v935
        %v1448 = vmul.f32 %v936, %v936
        %v1449 = vmul.f32 %v937, %v937
        %v1450 = vmul.f32 %v938, %v938
        %v1451 = vmul.f32 %v939, %v939
        %v1452 = vmul.f32 %v940, %v940
        %v1453 = vmul.f32 %v941, %v941
        %v1454 = vmul.f32 %v942, %v942
        %v1455 = vmul.f32 %v943, %v943
        %v1456 = vmul.f32 %v944, %v944
        %v1457 = vmul.f32 %v945, %v945
        %v1458 = vmul.f32 %v946, %v946
        %v1459 = vmul.f32 %v947, %v947
        %v1460 = vmul.f32 %v948, %v948
        %v1461 = vmul.f32 %v949, %v949
        %v1462 = vmul.f32 %v950, %v950
        %v1463 = vmul.f32 %v951, %v951
        %v1464 = vmul.f32 %v952, %v952
        %v1465 = vmul.f32 %v953, %v953
        %v1466 = vmul.f32 %v954, %v954
        %v1467 = vmul.f32 %v955, %v955
        %v1468 = vmul.f32 %v956, %v956
        %v1469 = vmul.f32 %v957, %v957
        %v1470 = vmul.f32 %v958, %v958
        %v1471 = vmul.f32 %v959, %v959
        %v1472 = vmul.f32 %v960, %v960
        %v1473 = vmul.f32 %v961, %v961
        %v1474 = vmul.f32 %v962, %v962
        %v1475 = vmul.f32 %v963, %v963
        %v1476 = vmul.f32 %v964, %v964
        %v1477 = vmul.f32 %v965, %v965
        %v1478 = vmul.f32 %v966, %v966
        %v1479 = vmul.f32 %v967, %v967
        %v1480 = vmul.f32 %v968, %v968
        %v1481 = vmul.f32 %v969, %v969
        %v1482 = vmul.f32 %v970, %v970
        %v1483 = vmul.f32 %v971, %v971
        %v1484 = vmul.f32 %v972, %v972
        %v1485 = vmul.f32 %v973, %v973
        %v1486 = vmul.f32 %v974, %v974
        %v1487 = vmul.f32 %v975, %v975
        %v1488 = vmul.f32 %v976, %v976
        %v1489 = vmul.f32 %v977, %v977
        %v1490 = vmul.f32 %v978, %v978
        %v1491 = vmul.f32 %v979, %v979
        %v1492 = vmul.f32 %v980, %v980
        %v1493 = vmul.f32 %v981, %v981
        %v1494 = vmul.f32 %v982, %v982
        %v1495 = vmul.f32 %v983, %v983
        %v1496 = vmul.f32 %v984, %v984
        %v1497 = vmul.f32 %v985, %v985
        %v1498 = vmul.f32 %v986, %v986
        %v1499 = vmul.f32 %v987, %v987
        %v1500 = vmul.f32 %v988, %v988
        %v1501 = vmul.f32 %v989, %v989
        %v1502 = vmul.f32 %v990, %v990
        %v1503 = vmul.f32 %v991, %v991
        %v1504 = vmul.f32 %v992, %v992
        %v1505 = vmul.f32 %v993, %v993
        %v1506 = vmul.f32 %v994, %v994
        %v1507 = vmul.f32 %v995, %v995
        %v1508 = vmul.f32 %v996, %v996
        %v1509 = vmul.f32 %v997, %v997
        %v1510 = vmul.f32 %v998, %v998
        %v1511 = vmul.f32 %v999, %v999
        %v1512 = vmul.f32 %v1000, %v1000
        %v1513 = vmul.f32 %v1001, %v1001
        %v1514 = vmul.f32 %v1002, %v1002
        %v1515 = vmul.f32 %v1003, %v1003
        %v1516 = vmul.f32 %v1004, %v1004
        %v1517 = vmul.f32 %v1005, %v1005
        %v1518 = vmul.f32 %v1006, %v1006
        %v1519 = vmul.f32 %v1007, %v1007
        %v1520 = vmul.f32 %v1008, %v1008
        %v1521 = vmul.f32 %v1009, %v1009
        %v1522 = vmul.f32 %v1010, %v1010
        %v1523 = vmul.f32 %v1011, %v1011
        %v1524 = vmul.f32 %v1012, %v1012
        %v1525 = vmul.f32 %v1013, %v1013
        %v1526 = vmul.f32 %v1014, %v1014
        %v1527 = vmul.f32 %v1015, %v1015
        %v1528 = vmul.f32 %v1016, %v1016
        %v1529 = vmul.f32 %v1017, %v1017
        %v1530 = vmul.f32 %v1018, %v1018
        %v1531 = vmul.f32 %v1019, %v1019
        %v1532 = vmul.f32 %v1020, %v1020
        %v1533 = vmul.f32 %v1021, %v1021
        %v1534 = vmul.f32 %v1022, %v1022
        %v1535 = vmul.f32 %v1023, %v1023
        %v1536 = vmul.f32 %v1024, %v1024
        %v1537 = vmul.f32 %v1025, %v1025
        %v1538 = vmul.f32 %v1026, %v1026
        %v1539 = vmul.f32 %v1027, %v1027
        %v1540 = vmul.f32 %v1028, %v1028
        %v1541 = vmul.f32 %v1029, %v1029
        %v1542 = vmul.f32 %v1030, %v1030
        %v1543 = vmul.f32 %v1031, %v1031
        %v1544 = vmul.f32 %v1032, %v1032
        %v1545 = vmul.f32 %v1033, %v1033
        %v1546 = vmul.f32 %v1034, %v1034
        %v1547 = vmul.f32 %v1035, %v1035
        %v1548 = vmul.f32 %v1036, %v1036
        %v1549 = vmul.f32 %v1037, %v1037
        %v1550 = vmul.f32 %v1038, %v1038
        %v1551 = vmul.f32 %v1039, %v1039
        %v1552 = vmul.f32 %v1040, %v1040
        %v1553 = vmul.f32 %v1041, %v1041
        %v1554 = vmul.f32 %v1042, %v1042
        %v1555 = vmul.f32 %v1043, %v1043
        %v1556 = vmul.f32 %v1044, %v1044
        %v1557 = vmul.f32 %v1045, %v1045
        %v1558 = vmul.f32 %v1046, %v1046
        %v1559 = vmul.f32 %v1047, %v1047
        %v1560 = vmul.f32 %v1048, %v1048
        %v1561 = vmul.f32 %v1049, %v1049
        %v1562 = vmul.f32 %v1050, %v1050
        %v1563 = vmul.f32 %v1051, %v1051
        %v1564 = vmul.f32 %v1052, %v1052
        %v1565 = vmul.f32 %v1053, %v1053
        %v1566 = vmul.f32 %v1054, %v1054
        %v1567 = vmul.f32 %v1055, %v1055
        %v1568 = vmul.f32 %v1056, %v1056
        %v1569 = vmul.f32 %v1057, %v1057
        %v1570 = vmul.f32 %v1058, %v1058
        %v1571 = vmul.f32 %v1059, %v1059
        %v1572 = vmul.f32 %v1060, %v1060
        %v1573 = vmul.f32 %v1061, %v1061
        %v1574 = vmul.f32 %v1062, %v1062
        %v1575 = vmul.f32 %v1063, %v1063
        %v1576 = vmul.f32 %v1064, %v1064
        %v1577 = vmul.f32 %v1065, %v1065
        %v1578 = vmul.f32 %v1066, %v1066
        %v1579 = vmul.f32 %v1067, %v1067
        %v1580 = vmul.f32 %v1068, %v1068
        %v1581 = vmul.f32 %v1069, %v1069
        %v1582 = vmul.f32 %v1070, %v1070
        %v1583 = vmul.f32 %v1071, %v1071
        %v1584 = vmul.f32 %v1072, %v1072
        %v1585 = vmul.f32 %v1073, %v1073
        %v1586 = vmul.f32 %v1074, %v1074
        %v1587 = vmul.f32 %v1075, %v1075
        %v1588 = vmul.f32 %v1076, %v1076
        %v1589 = vmul.f32 %v1077, %v1077
        %v1590 = vmul.f32 %v1078, %v1078
        %v1591 = vmul.f32 %v1079, %v1079
        %v1592 = vmul.f32 %v1080, %v1080
        %v1593 = vmul.f32 %v1081, %v1081
        %v1594 = vmul.f32 %v1082, %v1082
        %v1595 = vmul.f32 %v1083, %v1083
        %v1596 = vmul.f32 %v1084, %v1084
        %v1597 = vmul.f32 %v1085, %v1085
        %v1598 = vmul.f32 %v1086, %v1086
        %v1599 = vmul.f32 %v1087, %v1087
        %v1600 = vmul.f32 %v1088, %v1088
        %v1601 = vmul.f32 %v1089, %v1089
        %v1602 = vmul.f32 %v1090, %v1090
        %v1603 = vmul.f32 %v1091, %v1091
        %v1604 = vmul.f32 %v1092, %v1092
        %v1605 = vmul.f32 %v1093, %v1093
        %v1606 = vmul.f32 %v1094, %v1094
        %v1607 = vmul.f32 %v1095, %v1095
        %v1608 = vmul.f32 %v1096, %v1096
        %v1609 = vmul.f32 %v1097, %v1097
        %v1610 = vmul.f32 %v1098, %v1098
        %v1611 = vmul.f32 %v1099, %v1099
        %v1612 = vmul.f32 %v1100, %v1100
        %v1613 = vmul.f32 %v1101, %v1101
        %v1614 = vmul.f32 %v1102, %v1102
        %v1615 = vmul.f32 %v1103, %v1103
        %v1616 = vmul.f32 %v1104, %v1104
        %v1617 = vmul.f32 %v1105, %v1105
        %v1618 = vmul.f32 %v1106, %v1106
        %v1619 = vmul.f32 %v1107, %v1107
        %v1620 = vmul.f32 %v1108, %v1108
        %v1621 = vmul.f32 %v1109, %v1109
        %v1622 = vmul.f32 %v1110, %v1110
        %v1623 = vmul.f32 %v1111, %v1111
        %v1624 = vmul.f32 %v1112, %v1112
        %v1625 = vmul.f32 %v1113, %v1113
        %v1626 = vmul.f32 %v1114, %v1114
        %v1627 = vmul.f32 %v1115, %v1115
        %v1628 = vmul.f32 %v1116, %v1116
        %v1629 = vmul.f32 %v1117, %v1117
        %v1630 = vmul.f32 %v1118, %v1118
        %v1631 = vmul.f32 %v1119, %v1119
        %v1632 = vmul.f32 %v1120, %v1120
        %v1633 = vmul.f32 %v1121, %v1121
        %v1634 = vmul.f32 %v1122, %v1122
        %v1635 = vmul.f32 %v1123, %v1123
        %v1636 = vmul.f32 %v1124, %v1124
        %v1637 = vmul.f32 %v1125, %v1125
        %v1638 = vmul.f32 %v1126, %v1126
        %v1639 = vmul.f32 %v1127, %v1127
        %v1640 = vmul.f32 %v1128, %v1128
        %v1641 = vmul.f32 %v1129, %v1129
        %v1642 = vmul.f32 %v1130, %v1130
        %v1643 = vmul.f32 %v1131, %v1131
        %v1644 = vmul.f32 %v1132, %v1132
        %v1645 = vmul.f32 %v1133, %v1133
        %v1646 = vmul.f32 %v1134, %v1134
        %v1647 = vmul.f32 %v1135, %v1135
        %v1648 = vmul.f32 %v1136, %v1136
        %v1649 = vmul.f32 %v1137, %v1137
        %v1650 = vmul.f32 %v1138, %v1138
        %v1651 = vmul.f32 %v1139, %v1139
        %v1652 = vmul.f32 %v1140, %v1140
        %v1653 = vmul.f32 %v1141, %v1141
        %v1654 = vmul.f32 %v1142, %v1142
        %v1655 = vmul.f32 %v1143, %v1143
        %v1656 = vmul.f32 %v1144, %v1144
        %v1657 = vmul.f32 %v1145, %v1145
        %v1658 = vmul.f32 %v1146, %v1146
        %v1659 = vmul.f32 %v1147, %v1147
        %v1660 = vmul.f32 %v1148, %v1148
        %v1661 = vmul.f32 %v1149, %v1149
        %v1662 = vmul.f32 %v1150, %v1150
        %v1663 = vmul.f32 %v1151, %v1151
        %v1664 = vmul.f32 %v1152, %v1152
        %v1665 = vmul.f32 %v1153, %v1153
        %v1666 = vmul.f32 %v1154, %v1154
        %v1667 = vmul.f32 %v1155, %v1155
        %v1668 = vmul.f32 %v1156, %v1156
        %v1669 = vmul.f32 %v1157, %v1157
        %v1670 = vmul.f32 %v1158, %v1158
        %v1671 = vmul.f32 %v1159, %v1159
        %v1672 = vmul.f32 %v1160, %v1160
        %v1673 = vmul.f32 %v1161, %v1161
        %v1674 = vmul.f32 %v1162, %v1162
        %v1675 = vmul.f32 %v1163, %v1163
        %v1676 = vmul.f32 %v1164, %v1164
        %v1677 = vmul.f32 %v1165, %v1165
        %v1678 = vmul.f32 %v1166, %v1166
        %v1679 = vmul.f32 %v1167, %v1167
        %v1680 = vmul.f32 %v1168, %v1168
        %v1681 = vmul.f32 %v1169, %v1169
        %v1682 = vmul.f32 %v1170, %v1170
        %v1683 = vmul.f32 %v1171, %v1171
        %v1684 = vmul.f32 %v1172, %v1172
        %v1685 = vmul.f32 %v1173, %v1173
        %v1686 = vmul.f32 %v1174, %v1174
        %v1687 = vmul.f32 %v1175, %v1175
        %v1688 = vmul.f32 %v1176, %v1176
        %v1689 = vmul.f32 %v1177, %v1177
        %v1690 = vmul.f32 %v1178, %v1178
        %v1691 = vmul.f32 %v1179, %v1179
        %v1692 = vmul.f32 %v1180, %v1180
        %v1693 = vmul.f32 %v1181, %v1181
        %v1694 = vmul.f32 %v1182, %v1182
        %v1695 = vmul.f32 %v1183, %v1183
        %v1696 = vmul.f32 %v1184, %v1184
        %v1697 = vmul.f32 %v1185, %v1185
        %v1698 = vmul.f32 %v1186, %v1186
        %v1699 = vmul.f32 %v1187, %v1187
        %v1700 = vld [vmem:[#allocation5] sm:$0xff]
        %v1701 = vadd.f32 %v1188, %v1189
        %v1702 = vadd.f32 %v1701, %v1190
        %v1703 = vadd.f32 %v1702, %v1191
        %v1704 = vadd.f32 %v1703, %v1192
        %v1705 = vadd.f32 %v1704, %v1193
        %v1706 = vadd.f32 %v1705, %v1194
        %v1707 = vadd.f32 %v1706, %v1195
        %v1708 = vadd.f32 %v1707, %v1196
        %v1709 = vadd.f32 %v1708, %v1197
        %v1710 = vadd.f32 %v1709, %v1198
        %v1711 = vadd.f32 %v1710, %v1199
        %v1712 = vadd.f32 %v1711, %v1200
        %v1713 = vadd.f32 %v1712, %v1201
        %v1714 = vadd.f32 %v1713, %v1202
        %v1715 = vadd.f32 %v1714, %v1203
        %v1716 = vadd.f32 %v1715, %v1204
        %v1717 = vadd.f32 %v1716, %v1205
        %v1718 = vadd.f32 %v1717, %v1206
        %v1719 = vadd.f32 %v1718, %v1207
        %v1720 = vadd.f32 %v1719, %v1208
        %v1721 = vadd.f32 %v1720, %v1209
        %v1722 = vadd.f32 %v1721, %v1210
        %v1723 = vadd.f32 %v1722, %v1211
        %v1724 = vadd.f32 %v1723, %v1212
        %v1725 = vadd.f32 %v1724, %v1213
        %v1726 = vadd.f32 %v1725, %v1214
        %v1727 = vadd.f32 %v1726, %v1215
        %v1728 = vadd.f32 %v1727, %v1216
        %v1729 = vadd.f32 %v1728, %v1217
        %v1730 = vadd.f32 %v1729, %v1218
        %v1731 = vadd.f32 %v1730, %v1219
        %v1732 = vadd.f32 %v1731, %v1220
        %v1733 = vadd.f32 %v1732, %v1221
        %v1734 = vadd.f32 %v1733, %v1222
        %v1735 = vadd.f32 %v1734, %v1223
        %v1736 = vadd.f32 %v1735, %v1224
        %v1737 = vadd.f32 %v1736, %v1225
        %v1738 = vadd.f32 %v1737, %v1226
        %v1739 = vadd.f32 %v1738, %v1227
        %v1740 = vadd.f32 %v1739, %v1228
        %v1741 = vadd.f32 %v1740, %v1229
        %v1742 = vadd.f32 %v1741, %v1230
        %v1743 = vadd.f32 %v1742, %v1231
        %v1744 = vadd.f32 %v1743, %v1232
        %v1745 = vadd.f32 %v1744, %v1233
        %v1746 = vadd.f32 %v1745, %v1234
        %v1747 = vadd.f32 %v1746, %v1235
        %v1748 = vadd.f32 %v1747, %v1236
        %v1749 = vadd.f32 %v1748, %v1237
        %v1750 = vadd.f32 %v1749, %v1238
        %v1751 = vadd.f32 %v1750, %v1239
        %v1752 = vadd.f32 %v1751, %v1240
        %v1753 = vadd.f32 %v1752, %v1241
        %v1754 = vadd.f32 %v1753, %v1242
        %v1755 = vadd.f32 %v1754, %v1243
        %v1756 = vadd.f32 %v1755, %v1244
        %v1757 = vadd.f32 %v1756, %v1245
        %v1758 = vadd.f32 %v1757, %v1246
        %v1759 = vadd.f32 %v1758, %v1247
        %v1760 = vadd.f32 %v1759, %v1248
        %v1761 = vadd.f32 %v1760, %v1249
        %v1762 = vadd.f32 %v1761, %v1250
        %v1763 = vadd.f32 %v1762, %v1251
        %v1764 = vadd.f32 %v1763, %v1252
        %v1765 = vadd.f32 %v1764, %v1253
        %v1766 = vadd.f32 %v1765, %v1254
        %v1767 = vadd.f32 %v1766, %v1255
        %v1768 = vadd.f32 %v1767, %v1256
        %v1769 = vadd.f32 %v1768, %v1257
        %v1770 = vadd.f32 %v1769, %v1258
        %v1771 = vadd.f32 %v1770, %v1259
        %v1772 = vadd.f32 %v1771, %v1260
        %v1773 = vadd.f32 %v1772, %v1261
        %v1774 = vadd.f32 %v1773, %v1262
        %v1775 = vadd.f32 %v1774, %v1263
        %v1776 = vadd.f32 %v1775, %v1264
        %v1777 = vadd.f32 %v1776, %v1265
        %v1778 = vadd.f32 %v1777, %v1266
        %v1779 = vadd.f32 %v1778, %v1267
        %v1780 = vadd.f32 %v1779, %v1268
        %v1781 = vadd.f32 %v1780, %v1269
        %v1782 = vadd.f32 %v1781, %v1270
        %v1783 = vadd.f32 %v1782, %v1271
        %v1784 = vadd.f32 %v1783, %v1272
        %v1785 = vadd.f32 %v1784, %v1273
        %v1786 = vadd.f32 %v1785, %v1274
        %v1787 = vadd.f32 %v1786, %v1275
        %v1788 = vadd.f32 %v1787, %v1276
        %v1789 = vadd.f32 %v1788, %v1277
        %v1790 = vadd.f32 %v1789, %v1278
        %v1791 = vadd.f32 %v1790, %v1279
        %v1792 = vadd.f32 %v1791, %v1280
        %v1793 = vadd.f32 %v1792, %v1281
        %v1794 = vadd.f32 %v1793, %v1282
        %v1795 = vadd.f32 %v1794, %v1283
        %v1796 = vadd.f32 %v1795, %v1284
        %v1797 = vadd.f32 %v1796, %v1285
        %v1798 = vadd.f32 %v1797, %v1286
        %v1799 = vadd.f32 %v1798, %v1287
        %v1800 = vadd.f32 %v1799, %v1288
        %v1801 = vadd.f32 %v1800, %v1289
        %v1802 = vadd.f32 %v1801, %v1290
        %v1803 = vadd.f32 %v1802, %v1291
        %v1804 = vadd.f32 %v1803, %v1292
        %v1805 = vadd.f32 %v1804, %v1293
        %v1806 = vadd.f32 %v1805, %v1294
        %v1807 = vadd.f32 %v1806, %v1295
        %v1808 = vadd.f32 %v1807, %v1296
        %v1809 = vadd.f32 %v1808, %v1297
        %v1810 = vadd.f32 %v1809, %v1298
        %v1811 = vadd.f32 %v1810, %v1299
        %v1812 = vadd.f32 %v1811, %v1300
        %v1813 = vadd.f32 %v1812, %v1301
        %v1814 = vadd.f32 %v1813, %v1302
        %v1815 = vadd.f32 %v1814, %v1303
        %v1816 = vadd.f32 %v1815, %v1304
        %v1817 = vadd.f32 %v1816, %v1305
        %v1818 = vadd.f32 %v1817, %v1306
        %v1819 = vadd.f32 %v1818, %v1307
        %v1820 = vadd.f32 %v1819, %v1308
        %v1821 = vadd.f32 %v1820, %v1309
        %v1822 = vadd.f32 %v1821, %v1310
        %v1823 = vadd.f32 %v1822, %v1311
        %v1824 = vadd.f32 %v1823, %v1312
        %v1825 = vadd.f32 %v1824, %v1313
        %v1826 = vadd.f32 %v1825, %v1314
        %v1827 = vadd.f32 %v1826, %v1315
        %v1828 = vadd.f32 %v1827, %v1316
        %v1829 = vadd.f32 %v1828, %v1317
        %v1830 = vadd.f32 %v1829, %v1318
        %v1831 = vadd.f32 %v1830, %v1319
        %v1832 = vadd.f32 %v1831, %v1320
        %v1833 = vadd.f32 %v1832, %v1321
        %v1834 = vadd.f32 %v1833, %v1322
        %v1835 = vadd.f32 %v1834, %v1323
        %v1836 = vadd.f32 %v1835, %v1324
        %v1837 = vadd.f32 %v1836, %v1325
        %v1838 = vadd.f32 %v1837, %v1326
        %v1839 = vadd.f32 %v1838, %v1327
        %v1840 = vadd.f32 %v1839, %v1328
        %v1841 = vadd.f32 %v1840, %v1329
        %v1842 = vadd.f32 %v1841, %v1330
        %v1843 = vadd.f32 %v1842, %v1331
        %v1844 = vadd.f32 %v1843, %v1332
        %v1845 = vadd.f32 %v1844, %v1333
        %v1846 = vadd.f32 %v1845, %v1334
        %v1847 = vadd.f32 %v1846, %v1335
        %v1848 = vadd.f32 %v1847, %v1336
        %v1849 = vadd.f32 %v1848, %v1337
        %v1850 = vadd.f32 %v1849, %v1338
        %v1851 = vadd.f32 %v1850, %v1339
        %v1852 = vadd.f32 %v1851, %v1340
        %v1853 = vadd.f32 %v1852, %v1341
        %v1854 = vadd.f32 %v1853, %v1342
        %v1855 = vadd.f32 %v1854, %v1343
        %v1856 = vadd.f32 %v1855, %v1344
        %v1857 = vadd.f32 %v1856, %v1345
        %v1858 = vadd.f32 %v1857, %v1346
        %v1859 = vadd.f32 %v1858, %v1347
        %v1860 = vadd.f32 %v1859, %v1348
        %v1861 = vadd.f32 %v1860, %v1349
        %v1862 = vadd.f32 %v1861, %v1350
        %v1863 = vadd.f32 %v1862, %v1351
        %v1864 = vadd.f32 %v1863, %v1352
        %v1865 = vadd.f32 %v1864, %v1353
        %v1866 = vadd.f32 %v1865, %v1354
        %v1867 = vadd.f32 %v1866, %v1355
        %v1868 = vadd.f32 %v1867, %v1356
        %v1869 = vadd.f32 %v1868, %v1357
        %v1870 = vadd.f32 %v1869, %v1358
        %v1871 = vadd.f32 %v1870, %v1359
        %v1872 = vadd.f32 %v1871, %v1360
        %v1873 = vadd.f32 %v1872, %v1361
        %v1874 = vadd.f32 %v1873, %v1362
        %v1875 = vadd.f32 %v1874, %v1363
        %v1876 = vadd.f32 %v1875, %v1364
        %v1877 = vadd.f32 %v1876, %v1365
        %v1878 = vadd.f32 %v1877, %v1366
        %v1879 = vadd.f32 %v1878, %v1367
        %v1880 = vadd.f32 %v1879, %v1368
        %v1881 = vadd.f32 %v1880, %v1369
        %v1882 = vadd.f32 %v1881, %v1370
        %v1883 = vadd.f32 %v1882, %v1371
        %v1884 = vadd.f32 %v1883, %v1372
        %v1885 = vadd.f32 %v1884, %v1373
        %v1886 = vadd.f32 %v1885, %v1374
        %v1887 = vadd.f32 %v1886, %v1375
        %v1888 = vadd.f32 %v1887, %v1376
        %v1889 = vadd.f32 %v1888, %v1377
        %v1890 = vadd.f32 %v1889, %v1378
        %v1891 = vadd.f32 %v1890, %v1379
        %v1892 = vadd.f32 %v1891, %v1380
        %v1893 = vadd.f32 %v1892, %v1381
        %v1894 = vadd.f32 %v1893, %v1382
        %v1895 = vadd.f32 %v1894, %v1383
        %v1896 = vadd.f32 %v1895, %v1384
        %v1897 = vadd.f32 %v1896, %v1385
        %v1898 = vadd.f32 %v1897, %v1386
        %v1899 = vadd.f32 %v1898, %v1387
        %v1900 = vadd.f32 %v1899, %v1388
        %v1901 = vadd.f32 %v1900, %v1389
        %v1902 = vadd.f32 %v1901, %v1390
        %v1903 = vadd.f32 %v1902, %v1391
        %v1904 = vadd.f32 %v1903, %v1392
        %v1905 = vadd.f32 %v1904, %v1393
        %v1906 = vadd.f32 %v1905, %v1394
        %v1907 = vadd.f32 %v1906, %v1395
        %v1908 = vadd.f32 %v1907, %v1396
        %v1909 = vadd.f32 %v1908, %v1397
        %v1910 = vadd.f32 %v1909, %v1398
        %v1911 = vadd.f32 %v1910, %v1399
        %v1912 = vadd.f32 %v1911, %v1400
        %v1913 = vadd.f32 %v1912, %v1401
        %v1914 = vadd.f32 %v1913, %v1402
        %v1915 = vadd.f32 %v1914, %v1403
        %v1916 = vadd.f32 %v1915, %v1404
        %v1917 = vadd.f32 %v1916, %v1405
        %v1918 = vadd.f32 %v1917, %v1406
        %v1919 = vadd.f32 %v1918, %v1407
        %v1920 = vadd.f32 %v1919, %v1408
        %v1921 = vadd.f32 %v1920, %v1409
        %v1922 = vadd.f32 %v1921, %v1410
        %v1923 = vadd.f32 %v1922, %v1411
        %v1924 = vadd.f32 %v1923, %v1412
        %v1925 = vadd.f32 %v1924, %v1413
        %v1926 = vadd.f32 %v1925, %v1414
        %v1927 = vadd.f32 %v1926, %v1415
        %v1928 = vadd.f32 %v1927, %v1416
        %v1929 = vadd.f32 %v1928, %v1417
        %v1930 = vadd.f32 %v1929, %v1418
        %v1931 = vadd.f32 %v1930, %v1419
        %v1932 = vadd.f32 %v1931, %v1420
        %v1933 = vadd.f32 %v1932, %v1421
        %v1934 = vadd.f32 %v1933, %v1422
        %v1935 = vadd.f32 %v1934, %v1423
        %v1936 = vadd.f32 %v1935, %v1424
        %v1937 = vadd.f32 %v1936, %v1425
        %v1938 = vadd.f32 %v1937, %v1426
        %v1939 = vadd.f32 %v1938, %v1427
        %v1940 = vadd.f32 %v1939, %v1428
        %v1941 = vadd.f32 %v1940, %v1429
        %v1942 = vadd.f32 %v1941, %v1430
        %v1943 = vadd.f32 %v1942, %v1431
        %v1944 = vadd.f32 %v1943, %v1432
        %v1945 = vadd.f32 %v1944, %v1433
        %v1946 = vadd.f32 %v1945, %v1434
        %v1947 = vadd.f32 %v1946, %v1435
        %v1948 = vadd.f32 %v1947, %v1436
        %v1949 = vadd.f32 %v1948, %v1437
        %v1950 = vadd.f32 %v1949, %v1438
        %v1951 = vadd.f32 %v1950, %v1439
        %v1952 = vadd.f32 %v1951, %v1440
        %v1953 = vadd.f32 %v1952, %v1441
        %v1954 = vadd.f32 %v1953, %v1442
        %v1955 = vadd.f32 %v1954, %v1443
        %v1956 = vadd.f32 %v1955, %v1444
        %v1957 = vadd.f32 %v1956, %v1445
        %v1958 = vadd.f32 %v1957, %v1446
        %v1959 = vadd.f32 %v1958, %v1447
        %v1960 = vadd.f32 %v1959, %v1448
        %v1961 = vadd.f32 %v1960, %v1449
        %v1962 = vadd.f32 %v1961, %v1450
        %v1963 = vadd.f32 %v1962, %v1451
        %v1964 = vadd.f32 %v1963, %v1452
        %v1965 = vadd.f32 %v1964, %v1453
        %v1966 = vadd.f32 %v1965, %v1454
        %v1967 = vadd.f32 %v1966, %v1455
        %v1968 = vadd.f32 %v1967, %v1456
        %v1969 = vadd.f32 %v1968, %v1457
        %v1970 = vadd.f32 %v1969, %v1458
        %v1971 = vadd.f32 %v1970, %v1459
        %v1972 = vadd.f32 %v1971, %v1460
        %v1973 = vadd.f32 %v1972, %v1461
        %v1974 = vadd.f32 %v1973, %v1462
        %v1975 = vadd.f32 %v1974, %v1463
        %v1976 = vadd.f32 %v1975, %v1464
        %v1977 = vadd.f32 %v1976, %v1465
        %v1978 = vadd.f32 %v1977, %v1466
        %v1979 = vadd.f32 %v1978, %v1467
        %v1980 = vadd.f32 %v1979, %v1468
        %v1981 = vadd.f32 %v1980, %v1469
        %v1982 = vadd.f32 %v1981, %v1470
        %v1983 = vadd.f32 %v1982, %v1471
        %v1984 = vadd.f32 %v1983, %v1472
        %v1985 = vadd.f32 %v1984, %v1473
        %v1986 = vadd.f32 %v1985, %v1474
        %v1987 = vadd.f32 %v1986, %v1475
        %v1988 = vadd.f32 %v1987, %v1476
        %v1989 = vadd.f32 %v1988, %v1477
        %v1990 = vadd.f32 %v1989, %v1478
        %v1991 = vadd.f32 %v1990, %v1479
        %v1992 = vadd.f32 %v1991, %v1480
        %v1993 = vadd.f32 %v1992, %v1481
        %v1994 = vadd.f32 %v1993, %v1482
        %v1995 = vadd.f32 %v1994, %v1483
        %v1996 = vadd.f32 %v1995, %v1484
        %v1997 = vadd.f32 %v1996, %v1485
        %v1998 = vadd.f32 %v1997, %v1486
        %v1999 = vadd.f32 %v1998, %v1487
        %v2000 = vadd.f32 %v1999, %v1488
        %v2001 = vadd.f32 %v2000, %v1489
        %v2002 = vadd.f32 %v2001, %v1490
        %v2003 = vadd.f32 %v2002, %v1491
        %v2004 = vadd.f32 %v2003, %v1492
        %v2005 = vadd.f32 %v2004, %v1493
        %v2006 = vadd.f32 %v2005, %v1494
        %v2007 = vadd.f32 %v2006, %v1495
        %v2008 = vadd.f32 %v2007, %v1496
        %v2009 = vadd.f32 %v2008, %v1497
        %v2010 = vadd.f32 %v2009, %v1498
        %v2011 = vadd.f32 %v2010, %v1499
        %v2012 = vadd.f32 %v2011, %v1500
        %v2013 = vadd.f32 %v2012, %v1501
        %v2014 = vadd.f32 %v2013, %v1502
        %v2015 = vadd.f32 %v2014, %v1503
        %v2016 = vadd.f32 %v2015, %v1504
        %v2017 = vadd.f32 %v2016, %v1505
        %v2018 = vadd.f32 %v2017, %v1506
        %v2019 = vadd.f32 %v2018, %v1507
        %v2020 = vadd.f32 %v2019, %v1508
        %v2021 = vadd.f32 %v2020, %v1509
        %v2022 = vadd.f32 %v2021, %v1510
        %v2023 = vadd.f32 %v2022, %v1511
        %v2024 = vadd.f32 %v2023, %v1512
        %v2025 = vadd.f32 %v2024, %v1513
        %v2026 = vadd.f32 %v2025, %v1514
        %v2027 = vadd.f32 %v2026, %v1515
        %v2028 = vadd.f32 %v2027, %v1516
        %v2029 = vadd.f32 %v2028, %v1517
        %v2030 = vadd.f32 %v2029, %v1518
        %v2031 = vadd.f32 %v2030, %v1519
        %v2032 = vadd.f32 %v2031, %v1520
        %v2033 = vadd.f32 %v2032, %v1521
        %v2034 = vadd.f32 %v2033, %v1522
        %v2035 = vadd.f32 %v2034, %v1523
        %v2036 = vadd.f32 %v2035, %v1524
        %v2037 = vadd.f32 %v2036, %v1525
        %v2038 = vadd.f32 %v2037, %v1526
        %v2039 = vadd.f32 %v2038, %v1527
        %v2040 = vadd.f32 %v2039, %v1528
        %v2041 = vadd.f32 %v2040, %v1529
        %v2042 = vadd.f32 %v2041, %v1530
        %v2043 = vadd.f32 %v2042, %v1531
        %v2044 = vadd.f32 %v2043, %v1532
        %v2045 = vadd.f32 %v2044, %v1533
        %v2046 = vadd.f32 %v2045, %v1534
        %v2047 = vadd.f32 %v2046, %v1535
        %v2048 = vadd.f32 %v2047, %v1536
        %v2049 = vadd.f32 %v2048, %v1537
        %v2050 = vadd.f32 %v2049, %v1538
        %v2051 = vadd.f32 %v2050, %v1539
        %v2052 = vadd.f32 %v2051, %v1540
        %v2053 = vadd.f32 %v2052, %v1541
        %v2054 = vadd.f32 %v2053, %v1542
        %v2055 = vadd.f32 %v2054, %v1543
        %v2056 = vadd.f32 %v2055, %v1544
        %v2057 = vadd.f32 %v2056, %v1545
        %v2058 = vadd.f32 %v2057, %v1546
        %v2059 = vadd.f32 %v2058, %v1547
        %v2060 = vadd.f32 %v2059, %v1548
        %v2061 = vadd.f32 %v2060, %v1549
        %v2062 = vadd.f32 %v2061, %v1550
        %v2063 = vadd.f32 %v2062, %v1551
        %v2064 = vadd.f32 %v2063, %v1552
        %v2065 = vadd.f32 %v2064, %v1553
        %v2066 = vadd.f32 %v2065, %v1554
        %v2067 = vadd.f32 %v2066, %v1555
        %v2068 = vadd.f32 %v2067, %v1556
        %v2069 = vadd.f32 %v2068, %v1557
        %v2070 = vadd.f32 %v2069, %v1558
        %v2071 = vadd.f32 %v2070, %v1559
        %v2072 = vadd.f32 %v2071, %v1560
        %v2073 = vadd.f32 %v2072, %v1561
        %v2074 = vadd.f32 %v2073, %v1562
        %v2075 = vadd.f32 %v2074, %v1563
        %v2076 = vadd.f32 %v2075, %v1564
        %v2077 = vadd.f32 %v2076, %v1565
        %v2078 = vadd.f32 %v2077, %v1566
        %v2079 = vadd.f32 %v2078, %v1567
        %v2080 = vadd.f32 %v2079, %v1568
        %v2081 = vadd.f32 %v2080, %v1569
        %v2082 = vadd.f32 %v2081, %v1570
        %v2083 = vadd.f32 %v2082, %v1571
        %v2084 = vadd.f32 %v2083, %v1572
        %v2085 = vadd.f32 %v2084, %v1573
        %v2086 = vadd.f32 %v2085, %v1574
        %v2087 = vadd.f32 %v2086, %v1575
        %v2088 = vadd.f32 %v2087, %v1576
        %v2089 = vadd.f32 %v2088, %v1577
        %v2090 = vadd.f32 %v2089, %v1578
        %v2091 = vadd.f32 %v2090, %v1579
        %v2092 = vadd.f32 %v2091, %v1580
        %v2093 = vadd.f32 %v2092, %v1581
        %v2094 = vadd.f32 %v2093, %v1582
        %v2095 = vadd.f32 %v2094, %v1583
        %v2096 = vadd.f32 %v2095, %v1584
        %v2097 = vadd.f32 %v2096, %v1585
        %v2098 = vadd.f32 %v2097, %v1586
        %v2099 = vadd.f32 %v2098, %v1587
        %v2100 = vadd.f32 %v2099, %v1588
        %v2101 = vadd.f32 %v2100, %v1589
        %v2102 = vadd.f32 %v2101, %v1590
        %v2103 = vadd.f32 %v2102, %v1591
        %v2104 = vadd.f32 %v2103, %v1592
        %v2105 = vadd.f32 %v2104, %v1593
        %v2106 = vadd.f32 %v2105, %v1594
        %v2107 = vadd.f32 %v2106, %v1595
        %v2108 = vadd.f32 %v2107, %v1596
        %v2109 = vadd.f32 %v2108, %v1597
        %v2110 = vadd.f32 %v2109, %v1598
        %v2111 = vadd.f32 %v2110, %v1599
        %v2112 = vadd.f32 %v2111, %v1600
        %v2113 = vadd.f32 %v2112, %v1601
        %v2114 = vadd.f32 %v2113, %v1602
        %v2115 = vadd.f32 %v2114, %v1603
        %v2116 = vadd.f32 %v2115, %v1604
        %v2117 = vadd.f32 %v2116, %v1605
        %v2118 = vadd.f32 %v2117, %v1606
        %v2119 = vadd.f32 %v2118, %v1607
        %v2120 = vadd.f32 %v2119, %v1608
        %v2121 = vadd.f32 %v2120, %v1609
        %v2122 = vadd.f32 %v2121, %v1610
        %v2123 = vadd.f32 %v2122, %v1611
        %v2124 = vadd.f32 %v2123, %v1612
        %v2125 = vadd.f32 %v2124, %v1613
        %v2126 = vadd.f32 %v2125, %v1614
        %v2127 = vadd.f32 %v2126, %v1615
        %v2128 = vadd.f32 %v2127, %v1616
        %v2129 = vadd.f32 %v2128, %v1617
        %v2130 = vadd.f32 %v2129, %v1618
        %v2131 = vadd.f32 %v2130, %v1619
        %v2132 = vadd.f32 %v2131, %v1620
        %v2133 = vadd.f32 %v2132, %v1621
        %v2134 = vadd.f32 %v2133, %v1622
        %v2135 = vadd.f32 %v2134, %v1623
        %v2136 = vadd.f32 %v2135, %v1624
        %v2137 = vadd.f32 %v2136, %v1625
        %v2138 = vadd.f32 %v2137, %v1626
        %v2139 = vadd.f32 %v2138, %v1627
        %v2140 = vadd.f32 %v2139, %v1628
        %v2141 = vadd.f32 %v2140, %v1629
        %v2142 = vadd.f32 %v2141, %v1630
        %v2143 = vadd.f32 %v2142, %v1631
        %v2144 = vadd.f32 %v2143, %v1632
        %v2145 = vadd.f32 %v2144, %v1633
        %v2146 = vadd.f32 %v2145, %v1634
        %v2147 = vadd.f32 %v2146, %v1635
        %v2148 = vadd.f32 %v2147, %v1636
        %v2149 = vadd.f32 %v2148, %v1637
        %v2150 = vadd.f32 %v2149, %v1638
        %v2151 = vadd.f32 %v2150, %v1639
        %v2152 = vadd.f32 %v2151, %v1640
        %v2153 = vadd.f32 %v2152, %v1641
        %v2154 = vadd.f32 %v2153, %v1642
        %v2155 = vadd.f32 %v2154, %v1643
        %v2156 = vadd.f32 %v2155, %v1644
        %v2157 = vadd.f32 %v2156, %v1645
        %v2158 = vadd.f32 %v2157, %v1646
        %v2159 = vadd.f32 %v2158, %v1647
        %v2160 = vadd.f32 %v2159, %v1648
        %v2161 = vadd.f32 %v2160, %v1649
        %v2162 = vadd.f32 %v2161, %v1650
        %v2163 = vadd.f32 %v2162, %v1651
        %v2164 = vadd.f32 %v2163, %v1652
        %v2165 = vadd.f32 %v2164, %v1653
        %v2166 = vadd.f32 %v2165, %v1654
        %v2167 = vadd.f32 %v2166, %v1655
        %v2168 = vadd.f32 %v2167, %v1656
        %v2169 = vadd.f32 %v2168, %v1657
        %v2170 = vadd.f32 %v2169, %v1658
        %v2171 = vadd.f32 %v2170, %v1659
        %v2172 = vadd.f32 %v2171, %v1660
        %v2173 = vadd.f32 %v2172, %v1661
        %v2174 = vadd.f32 %v2173, %v1662
        %v2175 = vadd.f32 %v2174, %v1663
        %v2176 = vadd.f32 %v2175, %v1664
        %v2177 = vadd.f32 %v2176, %v1665
        %v2178 = vadd.f32 %v2177, %v1666
        %v2179 = vadd.f32 %v2178, %v1667
        %v2180 = vadd.f32 %v2179, %v1668
        %v2181 = vadd.f32 %v2180, %v1669
        %v2182 = vadd.f32 %v2181, %v1670
        %v2183 = vadd.f32 %v2182, %v1671
        %v2184 = vadd.f32 %v2183, %v1672
        %v2185 = vadd.f32 %v2184, %v1673
        %v2186 = vadd.f32 %v2185, %v1674
        %v2187 = vadd.f32 %v2186, %v1675
        %v2188 = vadd.f32 %v2187, %v1676
        %v2189 = vadd.f32 %v2188, %v1677
        %v2190 = vadd.f32 %v2189, %v1678
        %v2191 = vadd.f32 %v2190, %v1679
        %v2192 = vadd.f32 %v2191, %v1680
        %v2193 = vadd.f32 %v2192, %v1681
        %v2194 = vadd.f32 %v2193, %v1682
        %v2195 = vadd.f32 %v2194, %v1683
        %v2196 = vadd.f32 %v2195, %v1684
        %v2197 = vadd.f32 %v2196, %v1685
        %v2198 = vadd.f32 %v2197, %v1686
        %v2199 = vadd.f32 %v2198, %v1687
        %v2200 = vadd.f32 %v2199, %v1688
        %v2201 = vadd.f32 %v2200, %v1689
        %v2202 = vadd.f32 %v2201, %v1690
        %v2203 = vadd.f32 %v2202, %v1691
        %v2204 = vadd.f32 %v2203, %v1692
        %v2205 = vadd.f32 %v2204, %v1693
        %v2206 = vadd.f32 %v2205, %v1694
        %v2207 = vadd.f32 %v2206, %v1695
        %v2208 = vadd.f32 %v2207, %v1696
        %v2209 = vadd.f32 %v2208, %v1697
        %v2210 = vadd.f32 %v2209, %v1698
        %v2211 = vadd.f32 %v2210, %v1699
        %v2212 = vadd.f32 %v1700, %v2211
        %2213 = vst [vmem:[#allocation5] sm:$0xff] %v2212
        // Predicated region
        $region33: #{tpu_custom_call.1} parent=23 // pred_check
          %p2214 = pneg %p80
        $region34: #{tpu_custom_call.1} parent=23 // pred_check_branch
          %2216 = sbr.rel (%p2214) target = $region36
        $region35: #{tpu_custom_call.1} parent=23 // pred_region
          %2218 = vsyncadd [#allocation4], 0
          %s2219 = smul.addr %s20, 8
          %s2220 = scalar_lea.hbm %s1, %s2219
          %s2222 = sshll.u32 [#allocation5], 4
          %s2223 = int_to_ptr.vmem [resolvable:$true] %s2222
          %s2224 = sshll.u32 %s2220, 4
          %s2225 = int_to_ptr.hbm [resolvable:$true] %s2224
          %2227 = dma.vmem_to_hbm [thread:$0]  %s2223, 128, %s2225, [#allocation4]
        $region36: #{tpu_custom_call.1} parent=23 // pred_fallthru
          _
        // Predicated region
        $region37: #{tpu_custom_call.1} parent=23 // pred_check
          %p2228 = pneg %p80
        $region38: #{tpu_custom_call.1} parent=23 // pred_check_branch
          %2230 = sbr.rel (%p2228) target = $region40
        $region39: #{tpu_custom_call.1} parent=23 // pred_region
          %2232 = dma.done [#allocation4], 128
        $region40: #{tpu_custom_call.1} parent=23 // pred_fallthru
          _
      $region24: #{tpu_custom_call.1} parent=5 // pred_fallthru
        _
      %p2233 = scmp.le.s32.totalorder 2, %s11
      // Predicated region
      $region41: #{tpu_custom_call.1} parent=5 // pred_check
        %p2234 = pneg %p2233
      $region42: #{tpu_custom_call.1} parent=5 // pred_check_branch
        %2236 = sbr.rel (%p2234) target = $region44
      $region43: #{tpu_custom_call.1} parent=5 // pred_region
        %s2237 = ssub.s32 %s11, 2
      $region44: #{tpu_custom_call.1} parent=5 // pred_fallthru
        _
    $region6: #{tpu_custom_call.1} parent=1 // loop_footer
      %s15 = sadd.s32 1, %s11
    $region7: #{tpu_custom_call.1} parent=1 // loop_footer_branch
      %10 = sbr.rel target = $region3
    $region8: #{tpu_custom_call.1} parent=1 // loop_exit
      _
    %2238 = vsyncpa [#allocation3], 1
    %s2239 = scalar_lea.sflag [#allocation3], 1
    %2240 = vsyncpa %s2239, 1
    %2241 = vsyncpa [#allocation4], 1
    %s2242 = scalar_lea.sflag [#allocation4], 1
    %2243 = vsyncpa %s2242, 1

</llo_original>
